<compile_context>
chip_gen: v7x
topology: tpu7x:2x2x1
jax: 0.10.0
libtpu: 0.0.40
codegen_flags: <defaults>
</compile_context>

<pallas_src>
import jax
import jax.numpy as jnp
from jax.experimental import pallas as pl
from jax.experimental.pallas import tpu as pltpu

# ---- small, forward-consistent config ----------------------------------
NUM_AGENT = 4
IN_LEN = 2
NUM_CONTROL_FEATURES = 9
N = NUM_AGENT * IN_LEN + NUM_CONTROL_FEATURES     # 17 tokens
D_MODEL = 32
N_HEADS = 2                                       # n_heads > 1 so project_out=True
HEAD_DIM = D_MODEL // N_HEADS                     # 16  (to_qkv outputs head_dim*3)
D = HEAD_DIM // N_HEADS                           # 8   per-head dim after rearrange
SCALE = HEAD_DIM ** (-0.5)                        # matches PyTorch (head_dim ** -0.5)
B = 2

G = B * N_HEADS                                   # (batch, head) pairs
G2 = 2 * G                                        # x {normal, agent-self} branches


# ---- Pallas kernel: whole batch in a single invocation -------------------
def _agent_aware_attn_kernel(x_ref, w_proj_ref, w_out_ref, b_out_ref, mask_ref,
                             out_ref, attn_ref):
    # x: (B, N, D_MODEL). Replicate along the leading axis so every
    # (branch, b, h) element of the batched projection sees its batch's tokens.
    # Only leading-dim slices / concatenation -- no lane or sublane relayout.
    x = x_ref[...]
    x_bh = jnp.concatenate(
        [x[b:b + 1] for b in range(B) for _ in range(N_HEADS)], axis=0)   # (G, N, DM)
    x_all = jnp.concatenate([x_bh, x_bh], axis=0)                         # (G2, N, DM)

    # One fused, batched projection. Columns per batch element g are
    # [Wq_h | Wk_h | Wv_h] for the normal branch and [Wqs_h | Wks_h | .]
    # for the agent-self branch (the '.' columns are never read).
    proj = jnp.einsum('gnc,gcd->gnd', x_all, w_proj_ref[...],
                      preferred_element_type=jnp.float32)                 # (G2, N, 3D)

    q_all = proj[:, :, 0:D]                                               # (G2, N, D)
    k_all = proj[:, :, D:2 * D]                                           # (G2, N, D)
    v = proj[0:G, :, 2 * D:3 * D]                                         # (G,  N, D)

    # Both branches and both heads in one batched matmul; contraction is on
    # the last dim of both operands (no explicit transpose of k).
    s = jnp.einsum('gnd,gmd->gnm', q_all, k_all,
                   preferred_element_type=jnp.float32) * SCALE            # (G2, N, N)
    dots = s[0:G]                                                         # (G, N, N)
    dots_self = s[G:G2]                                                   # (G, N, N)

    # attn_mask entries are exactly 0/1, so the blend is a select.
    mask_b = jnp.broadcast_to(mask_ref[...][None, :, :], (G, N, N))
    dots_all = jnp.where(mask_b > 0.5, dots_self, dots)

    # Numerically-stable softmax over the last axis (nn.Softmax(dim=-1)).
    dots_all = dots_all - jnp.max(dots_all, axis=-1, keepdims=True)
    e = jnp.exp(dots_all)
    denom = jnp.sum(e, axis=-1, keepdims=True)
    attn = e * pl.reciprocal(denom, approx=True)                          # (G, N, N)

    # Single (B, H, N, N) writeback (leading-dim reshape only).
    attn_ref[...] = attn.reshape(B, N_HEADS, N, N).astype(attn_ref.dtype)

    # out = attn @ v per (b, h). 'b h n d -> b n (h d)' followed by the to_out
    # Linear == sum over heads of (attn_h @ v_h) @ W_out[h*D:(h+1)*D, :].
    o = jnp.einsum('gnm,gmd->gnd', attn, v,
                   preferred_element_type=jnp.float32)                    # (G, N, D)
    op = jnp.einsum('gnd,gdm->gnm', o, w_out_ref[...],
                    preferred_element_type=jnp.float32)                   # (G, N, DM)

    # TODO(synk): training-mode dropout not implemented (eval / identity only).
    out_rows = [
        sum(op[b * N_HEADS + h] for h in range(N_HEADS)) + b_out_ref[...]
        for b in range(B)
    ]
    out_ref[...] = jnp.stack(out_rows, axis=0).astype(out_ref.dtype)


# ---- wrapper -------------------------------------------------------------
def _prepare_params(w_qkv, w_qks, w_out):
    """Repack the Linear weights into per-(b, h) batched operands (layout plumbing)."""
    w_q = w_qkv[:, 0 * HEAD_DIM:1 * HEAD_DIM]
    w_k = w_qkv[:, 1 * HEAD_DIM:2 * HEAD_DIM]
    w_v = w_qkv[:, 2 * HEAD_DIM:3 * HEAD_DIM]
    w_qs = w_qks[:, 0 * HEAD_DIM:1 * HEAD_DIM]
    w_ks = w_qks[:, 1 * HEAD_DIM:2 * HEAD_DIM]

    def head_block(wa, wb, wc, h):
        sl = slice(h * D, (h + 1) * D)
        return jnp.concatenate([wa[:, sl], wb[:, sl], wc[:, sl]], axis=1)  # (DM, 3D)

    w_norm = jnp.stack([head_block(w_q, w_k, w_v, h) for h in range(N_HEADS)])    # (H, DM, 3D)
    w_self = jnp.stack([head_block(w_qs, w_ks, w_v, h) for h in range(N_HEADS)])  # (H, DM, 3D)
    w_proj = jnp.concatenate(
        [jnp.tile(w_norm, (B, 1, 1)), jnp.tile(w_self, (B, 1, 1))], axis=0)       # (G2, DM, 3D)

    w_out_g = jnp.tile(
        jnp.stack([w_out[h * D:(h + 1) * D, :] for h in range(N_HEADS)]),         # (H, D, DM)
        (B, 1, 1))                                                                # (G, D, DM)
    return w_proj, w_out_g


@jax.jit
def agent_aware_attention(x, w_qkv, w_qks, w_out, b_out, attn_mask):
    w_proj, w_out_g = _prepare_params(w_qkv, w_qks, w_out)
    out_shapes = (
        jax.ShapeDtypeStruct((B, N, D_MODEL), jnp.float32),
        jax.ShapeDtypeStruct((B, N_HEADS, N, N), jnp.float32),
    )
    vmem = pl.BlockSpec(memory_space=pltpu.MemorySpace.VMEM)
    return pl.pallas_call(
        _agent_aware_attn_kernel,
        out_shape=out_shapes,
        in_specs=[vmem, vmem, vmem, vmem, vmem],
        out_specs=(vmem, vmem),
    )(x, w_proj, w_out_g, b_out, attn_mask)


# ---- helpers -------------------------------------------------------------
def build_attn_mask():
    m = jnp.eye(NUM_AGENT, dtype=jnp.float32)
    m = jnp.repeat(m, IN_LEN, axis=1)              # repeat_interleave dim=1
    m = jnp.repeat(m, IN_LEN, axis=0)              # repeat_interleave dim=0
    m = jnp.pad(m, ((0, NUM_CONTROL_FEATURES), (0, NUM_CONTROL_FEATURES)))
    return m                                       # (N, N)


def reference(x, w_qkv, w_qks, w_out, b_out, mask):
    """Pure-JAX reference mirroring the PyTorch forward."""
    qkv = x @ w_qkv
    q, k, v = jnp.split(qkv, 3, axis=-1)
    qks = x @ w_qks
    q_s, k_s = jnp.split(qks, 2, axis=-1)

    def to_heads(t):
        bsz, n, _ = t.shape
        return t.reshape(bsz, n, N_HEADS, D).transpose(0, 2, 1, 3)

    q, k, v, q_s, k_s = map(to_heads, (q, k, v, q_s, k_s))
    dots = jnp.einsum('bhnd,bhmd->bhnm', q, k) * SCALE
    dots_s = jnp.einsum('bhnd,bhmd->bhnm', q_s, k_s) * SCALE
    dots_all = mask[None, None] * dots_s + (1.0 - mask[None, None]) * dots
    attn = jax.nn.softmax(dots_all, axis=-1)
    out = jnp.einsum('bhnm,bhmd->bhnd', attn, v)
    out = out.transpose(0, 2, 1, 3).reshape(x.shape[0], N, HEAD_DIM)
    return out @ w_out + b_out, attn


if __name__ == "__main__":
    key = jax.random.PRNGKey(0)
    kx, k1, k2, k3, k4 = jax.random.split(key, 5)

    x = jax.random.normal(kx, (B, N, D_MODEL), dtype=jnp.float32)

    # deterministic param init (uniform, fan_in-scaled like nn.Linear default)
    def lin_init(k, fan_in, fan_out):
        bound = 1.0 / (fan_in ** 0.5)
        return jax.random.uniform(k, (fan_in, fan_out), jnp.float32, -bound, bound)

    w_qkv = lin_init(k1, D_MODEL, 3 * HEAD_DIM)    # to_qkv (bias=False)
    w_qks = lin_init(k2, D_MODEL, 2 * HEAD_DIM)    # to_qk_self (bias=False)
    w_out = lin_init(k3, HEAD_DIM, D_MODEL)        # to_out Linear
    b_out = jax.random.uniform(k4, (1, D_MODEL), jnp.float32,
                               -(1.0 / HEAD_DIM ** 0.5), 1.0 / HEAD_DIM ** 0.5)

    mask = build_attn_mask()

    out, attn = agent_aware_attention(x, w_qkv, w_qks, w_out, b_out, mask)
    jax.block_until_ready((out, attn))

    ref_out, ref_attn = reference(x, w_qkv, w_qks, w_out, b_out, mask)
    # tolerance covers MXU matmul rounding + EUP approximate reciprocal in softmax
    assert jnp.allclose(out, ref_out, atol=2e-3, rtol=2e-3), "output mismatch"
    assert jnp.allclose(attn, ref_attn, atol=2e-3, rtol=2e-3), "attn mismatch"

    print("KERNEL_OK")
</pallas_src>

<mosaic_0001>
module attributes {stable_mosaic.version = 11 : i64} {
  func.func @_agent_aware_attn_kernel(%arg0: memref<2x17x32xf32, #tpu.memory_space<vmem>>, %arg1: memref<8x32x24xf32, #tpu.memory_space<vmem>>, %arg2: memref<4x8x32xf32, #tpu.memory_space<vmem>>, %arg3: memref<1x32xf32, #tpu.memory_space<vmem>>, %arg4: memref<17x17xf32, #tpu.memory_space<vmem>>, %arg5: memref<2x17x32xf32, #tpu.memory_space<vmem>>, %arg6: memref<2x2x17x17xf32, #tpu.memory_space<vmem>>) attributes {dimension_semantics = [], scalar_prefetch = 0 : i64, scratch_operands = 0 : i64, tpu.core_type = #tpu.core_type<tc>} {
    %c0 = arith.constant 0 : index
    %c0_0 = arith.constant 0 : index
    %c0_1 = arith.constant 0 : index
    %0 = vector.load %arg0[%c0, %c0_0, %c0_1] : memref<2x17x32xf32, #tpu.memory_space<vmem>>, vector<2x17x32xf32>
    %1 = vector.extract_strided_slice %0 {offsets = [0, 0, 0], sizes = [1, 17, 32], strides = [1, 1, 1]} : vector<2x17x32xf32> to vector<1x17x32xf32>
    %2 = vector.extract_strided_slice %0 {offsets = [0, 0, 0], sizes = [1, 17, 32], strides = [1, 1, 1]} : vector<2x17x32xf32> to vector<1x17x32xf32>
    %3 = vector.extract_strided_slice %0 {offsets = [1, 0, 0], sizes = [1, 17, 32], strides = [1, 1, 1]} : vector<2x17x32xf32> to vector<1x17x32xf32>
    %4 = vector.extract_strided_slice %0 {offsets = [1, 0, 0], sizes = [1, 17, 32], strides = [1, 1, 1]} : vector<2x17x32xf32> to vector<1x17x32xf32>
    %5 = tpu.concatenate %1, %2, %3, %4 in 0 : vector<1x17x32xf32>, vector<1x17x32xf32>, vector<1x17x32xf32>, vector<1x17x32xf32> -> vector<4x17x32xf32>
    %6 = tpu.concatenate %5, %5 in 0 : vector<4x17x32xf32>, vector<4x17x32xf32> -> vector<8x17x32xf32>
    %c0_2 = arith.constant 0 : index
    %c0_3 = arith.constant 0 : index
    %c0_4 = arith.constant 0 : index
    %7 = vector.load %arg1[%c0_2, %c0_3, %c0_4] : memref<8x32x24xf32, #tpu.memory_space<vmem>>, vector<8x32x24xf32>
    "tpu.trace_start"() <{level = 10 : i32, message = "gnc,gcd->gnd"}> : () -> ()
    %cst = arith.constant dense<0.000000e+00> : vector<8x17x24xf32>
    %8 = tpu.matmul %6, %7, %cst {dimension_numbers = #tpu.dot_dimension_numbers<[2], [1], [1], [2], [0, 0, 0, 1, 1, 2], [0], [0]>} : vector<8x17x32xf32>, vector<8x32x24xf32>, vector<8x17x24xf32> -> vector<8x17x24xf32>
    "tpu.trace_stop"() : () -> ()
    %9 = vector.extract_strided_slice %8 {offsets = [0, 0, 0], sizes = [8, 17, 8], strides = [1, 1, 1]} : vector<8x17x24xf32> to vector<8x17x8xf32>
    %10 = vector.extract_strided_slice %8 {offsets = [0, 0, 8], sizes = [8, 17, 8], strides = [1, 1, 1]} : vector<8x17x24xf32> to vector<8x17x8xf32>
    %11 = vector.extract_strided_slice %8 {offsets = [0, 0, 16], sizes = [4, 17, 8], strides = [1, 1, 1]} : vector<8x17x24xf32> to vector<4x17x8xf32>
    "tpu.trace_start"() <{level = 10 : i32, message = "gnd,gmd->gnm"}> : () -> ()
    %cst_5 = arith.constant dense<0.000000e+00> : vector<8x17x17xf32>
    %12 = tpu.matmul %9, %10, %cst_5 {dimension_numbers = #tpu.dot_dimension_numbers<[2], [2], [1], [1], [0, 0, 0, 1, 1, 1], [0], [0]>} : vector<8x17x8xf32>, vector<8x17x8xf32>, vector<8x17x17xf32> -> vector<8x17x17xf32>
    "tpu.trace_stop"() : () -> ()
    %cst_6 = arith.constant 2.500000e-01 : f32
    %13 = vector.broadcast %cst_6 : f32 to vector<8x17x17xf32>
    %14 = arith.mulf %12, %13 : vector<8x17x17xf32>
    %15 = vector.extract_strided_slice %14 {offsets = [0, 0, 0], sizes = [4, 17, 17], strides = [1, 1, 1]} : vector<8x17x17xf32> to vector<4x17x17xf32>
    %16 = vector.extract_strided_slice %14 {offsets = [4, 0, 0], sizes = [4, 17, 17], strides = [1, 1, 1]} : vector<8x17x17xf32> to vector<4x17x17xf32>
    %c0_7 = arith.constant 0 : index
    %c0_8 = arith.constant 0 : index
    %17 = vector.load %arg4[%c0_7, %c0_8] : memref<17x17xf32, #tpu.memory_space<vmem>>, vector<17x17xf32>
    %18 = vector.shape_cast %17 : vector<17x17xf32> to vector<1x17x17xf32>
    %19 = vector.shape_cast %18 : vector<1x17x17xf32> to vector<1x17x17xf32>
    %20 = vector.broadcast %19 : vector<1x17x17xf32> to vector<4x17x17xf32>
    %cst_9 = arith.constant 5.000000e-01 : f32
    %21 = vector.broadcast %cst_9 : f32 to vector<4x17x17xf32>
    %22 = arith.cmpf ogt, %20, %21 : vector<4x17x17xf32>
    %23 = arith.select %22, %16, %15 : vector<4x17x17xi1>, vector<4x17x17xf32>
    %cst_10 = arith.constant dense<0xFF800000> : vector<4x17xf32>
    %24 = vector.multi_reduction <maximumf>, %23, %cst_10 [2] : vector<4x17x17xf32> to vector<4x17xf32>
    %25 = vector.shape_cast %24 : vector<4x17xf32> to vector<4x17x1xf32>
    %26 = vector.broadcast %25 : vector<4x17x1xf32> to vector<4x17x17xf32>
    %27 = arith.subf %23, %26 : vector<4x17x17xf32>
    %28 = math.exp %27 : vector<4x17x17xf32>
    %cst_11 = arith.constant dense<0.000000e+00> : vector<4x17xf32>
    %29 = vector.multi_reduction <add>, %28, %cst_11 [2] : vector<4x17x17xf32> to vector<4x17xf32>
    %30 = vector.shape_cast %29 : vector<4x17xf32> to vector<4x17x1xf32>
    %31 = tpu.reciprocal %30 {approx = true} : vector<4x17x1xf32> -> vector<4x17x1xf32>
    %32 = vector.broadcast %31 : vector<4x17x1xf32> to vector<4x17x17xf32>
    %33 = arith.mulf %28, %32 : vector<4x17x17xf32>
    %34 = vector.shape_cast %33 : vector<4x17x17xf32> to vector<2x2x17x17xf32>
    %c0_12 = arith.constant 0 : index
    %c0_13 = arith.constant 0 : index
    %c0_14 = arith.constant 0 : index
    %c0_15 = arith.constant 0 : index
    %35 = vector.load %arg6[%c0_12, %c0_13, %c0_14, %c0_15] : memref<2x2x17x17xf32, #tpu.memory_space<vmem>>, vector<2x2x17x17xf32>
    tpu.vector_store %arg6[%c0_12, %c0_13, %c0_14, %c0_15], %34 {strides = array<i32>} : memref<2x2x17x17xf32, #tpu.memory_space<vmem>>, vector<2x2x17x17xf32>,
    "tpu.trace_start"() <{level = 10 : i32, message = "gnm,gmd->gnd"}> : () -> ()
    %cst_16 = arith.constant dense<0.000000e+00> : vector<4x17x8xf32>
    %36 = tpu.matmul %33, %11, %cst_16 {dimension_numbers = #tpu.dot_dimension_numbers<[2], [1], [1], [2], [0, 0, 0, 1, 1, 2], [0], [0]>} : vector<4x17x17xf32>, vector<4x17x8xf32>, vector<4x17x8xf32> -> vector<4x17x8xf32>
    "tpu.trace_stop"() : () -> ()
    %c0_17 = arith.constant 0 : index
    %c0_18 = arith.constant 0 : index
    %c0_19 = arith.constant 0 : index
    %37 = vector.load %arg2[%c0_17, %c0_18, %c0_19] : memref<4x8x32xf32, #tpu.memory_space<vmem>>, vector<4x8x32xf32>
    "tpu.trace_start"() <{level = 10 : i32, message = "gnd,gdm->gnm"}> : () -> ()
    %cst_20 = arith.constant dense<0.000000e+00> : vector<4x17x32xf32>
    %38 = tpu.matmul %36, %37, %cst_20 {dimension_numbers = #tpu.dot_dimension_numbers<[2], [1], [1], [2], [0, 0, 0, 1, 1, 2], [0], [0]>} : vector<4x17x8xf32>, vector<4x8x32xf32>, vector<4x17x32xf32> -> vector<4x17x32xf32>
    "tpu.trace_stop"() : () -> ()
    %39 = vector.extract_strided_slice %38 {offsets = [0, 0, 0], sizes = [1, 17, 32], strides = [1, 1, 1]} : vector<4x17x32xf32> to vector<1x17x32xf32>
    %40 = vector.shape_cast %39 : vector<1x17x32xf32> to vector<17x32xf32>
    %cst_21 = arith.constant 0.000000e+00 : f32
    %41 = vector.broadcast %cst_21 : f32 to vector<17x32xf32>
    %42 = arith.addf %41, %40 : vector<17x32xf32>
    %43 = vector.extract_strided_slice %38 {offsets = [1, 0, 0], sizes = [1, 17, 32], strides = [1, 1, 1]} : vector<4x17x32xf32> to vector<1x17x32xf32>
    %44 = vector.shape_cast %43 : vector<1x17x32xf32> to vector<17x32xf32>
    %45 = arith.addf %42, %44 : vector<17x32xf32>
    %c0_22 = arith.constant 0 : index
    %c0_23 = arith.constant 0 : index
    %46 = vector.load %arg3[%c0_22, %c0_23] : memref<1x32xf32, #tpu.memory_space<vmem>>, vector<1x32xf32>
    %47 = vector.broadcast %46 : vector<1x32xf32> to vector<17x32xf32>
    %48 = arith.addf %45, %47 : vector<17x32xf32>
    %49 = vector.extract_strided_slice %38 {offsets = [2, 0, 0], sizes = [1, 17, 32], strides = [1, 1, 1]} : vector<4x17x32xf32> to vector<1x17x32xf32>
    %50 = vector.shape_cast %49 : vector<1x17x32xf32> to vector<17x32xf32>
    %cst_24 = arith.constant 0.000000e+00 : f32
    %51 = vector.broadcast %cst_24 : f32 to vector<17x32xf32>
    %52 = arith.addf %51, %50 : vector<17x32xf32>
    %53 = vector.extract_strided_slice %38 {offsets = [3, 0, 0], sizes = [1, 17, 32], strides = [1, 1, 1]} : vector<4x17x32xf32> to vector<1x17x32xf32>
    %54 = vector.shape_cast %53 : vector<1x17x32xf32> to vector<17x32xf32>
    %55 = arith.addf %52, %54 : vector<17x32xf32>
    %c0_25 = arith.constant 0 : index
    %c0_26 = arith.constant 0 : index
    %56 = vector.load %arg3[%c0_25, %c0_26] : memref<1x32xf32, #tpu.memory_space<vmem>>, vector<1x32xf32>
    %57 = vector.broadcast %56 : vector<1x32xf32> to vector<17x32xf32>
    %58 = arith.addf %55, %57 : vector<17x32xf32>
    %59 = vector.shape_cast %48 : vector<17x32xf32> to vector<1x17x32xf32>
    %60 = vector.shape_cast %58 : vector<17x32xf32> to vector<1x17x32xf32>
    %61 = tpu.concatenate %59, %60 in 0 : vector<1x17x32xf32>, vector<1x17x32xf32> -> vector<2x17x32xf32>
    %c0_27 = arith.constant 0 : index
    %c0_28 = arith.constant 0 : index
    %c0_29 = arith.constant 0 : index
    %62 = vector.load %arg5[%c0_27, %c0_28, %c0_29] : memref<2x17x32xf32, #tpu.memory_space<vmem>>, vector<2x17x32xf32>
    tpu.vector_store %arg5[%c0_27, %c0_28, %c0_29], %61 {strides = array<i32>} : memref<2x17x32xf32, #tpu.memory_space<vmem>>, vector<2x17x32xf32>,
    return
  }
}

</mosaic_0001>

<llo_original>
// kernel: agent_aware_attention.1
$region0: #{agent_aware_attention.1}
  #allocation0 [shape = 'u32[]', space=smem, size = 0x4, offset = 0x4, fixed_abs, tag = 'smem constant byte address 0x4 - core index']
  #allocation1 [shape = 'u32[144,128]{1,0:T(1,128)}', space=vmem, size = 0x12000, scoped, tag = 'internal scratch']
  %s0 = inlined_call_operand.vmem [shape: f32[2,17,32], index: 0, kind: input, shape index: {}]
  %s1 = inlined_call_operand.vmem [shape: f32[8,32,24], index: 1, kind: input, shape index: {}]
  %s2 = inlined_call_operand.vmem [shape: f32[4,8,32], index: 2, kind: input, shape index: {}]
  %s3 = inlined_call_operand.vmem [shape: f32[1,32], index: 3, kind: input, shape index: {}]
  %s4 = inlined_call_operand.vmem [shape: f32[17,17], index: 4, kind: input, shape index: {}]
  %s5 = inlined_call_operand.vmem [shape: f32[2,17,32], index: 5, kind: output, shape index: {0}]
  %s6 = inlined_call_operand.vmem [shape: f32[2,2,17,17], index: 6, kind: output, shape index: {1}]
  %7 = xla_tuple %s5, %s6
  %s8 = sld [smem:[#allocation0]]
  $region38: #{agent_aware_attention.1} parent=0
    _
  %s10 = ssub.s32 1, %s8
  %s11 = scalar_select 0, %s10, %s8
  // Predicated region
  $region2: #{agent_aware_attention.1} parent=0 // pred_check
    _
  $region3: #{agent_aware_attention.1} parent=0 // pred_check_branch
    %13 = sbr.rel (0) target = $region5
  $region4: #{agent_aware_attention.1} parent=0 // pred_region
    _
  $region5: #{agent_aware_attention.1} parent=0 // pred_fallthru
    _
  // Predicated region
  $region6: #{agent_aware_attention.1} parent=0 // pred_check
    _
  $region7: #{agent_aware_attention.1} parent=0 // pred_check_branch
    %15 = sbr.rel (0) target = $region9
  $region8: #{agent_aware_attention.1} parent=0 // pred_region
    _
  $region9: #{agent_aware_attention.1} parent=0 // pred_fallthru
    _
  // Predicated region
  $region10: #{agent_aware_attention.1} parent=0 // pred_check
    _
  $region11: #{agent_aware_attention.1} parent=0 // pred_check_branch
    %17 = sbr.rel (0) target = $region13
  $region12: #{agent_aware_attention.1} parent=0 // pred_region
    _
  $region13: #{agent_aware_attention.1} parent=0 // pred_fallthru
    _
  // Predicated region
  $region14: #{agent_aware_attention.1} parent=0 // pred_check
    _
  $region15: #{agent_aware_attention.1} parent=0 // pred_check_branch
    %19 = sbr.rel (0) target = $region17
  $region16: #{agent_aware_attention.1} parent=0 // pred_region
    _
  $region17: #{agent_aware_attention.1} parent=0 // pred_fallthru
    _
  // Predicated region
  $region18: #{agent_aware_attention.1} parent=0 // pred_check
    _
  $region19: #{agent_aware_attention.1} parent=0 // pred_check_branch
    %21 = sbr.rel (0) target = $region21
  $region20: #{agent_aware_attention.1} parent=0 // pred_region
    _
  $region21: #{agent_aware_attention.1} parent=0 // pred_fallthru
    _
  %v22 = vld [vmem:[%s0] sm:$0xff]
  %v23 = vld [vmem:[%s0 + $0x8] sm:$0xff]
  %v24 = vld [vmem:[%s0 + $0x10] sm:$0x1]
  %v25 = vld [vmem:[%s0 + $0x18] sm:$0xff]
  %v26 = vld [vmem:[%s0 + $0x20] sm:$0xff]
  %v27 = vld [vmem:[%s0 + $0x28] sm:$0x1]
  %v28 = vld [vmem:[%s1] sm:$0xff]
  %v29 = vld [vmem:[%s1 + $0x8] sm:$0xff]
  %v30 = vld [vmem:[%s1 + $0x10] sm:$0xff]
  %v31 = vld [vmem:[%s1 + $0x18] sm:$0xff]
  %v32 = vld [vmem:[%s1 + $0x20] sm:$0xff]
  %v33 = vld [vmem:[%s1 + $0x28] sm:$0xff]
  %v34 = vld [vmem:[%s1 + $0x30] sm:$0xff]
  %v35 = vld [vmem:[%s1 + $0x38] sm:$0xff]
  %v36 = vld [vmem:[%s1 + $0x40] sm:$0xff]
  %v37 = vld [vmem:[%s1 + $0x48] sm:$0xff]
  %v38 = vld [vmem:[%s1 + $0x50] sm:$0xff]
  %v39 = vld [vmem:[%s1 + $0x58] sm:$0xff]
  %v40 = vld [vmem:[%s1 + $0x60] sm:$0xff]
  %v41 = vld [vmem:[%s1 + $0x68] sm:$0xff]
  %v42 = vld [vmem:[%s1 + $0x70] sm:$0xff]
  %v43 = vld [vmem:[%s1 + $0x78] sm:$0xff]
  %v44 = vld [vmem:[%s1 + $0x80] sm:$0xff]
  %v45 = vld [vmem:[%s1 + $0x88] sm:$0xff]
  %v46 = vld [vmem:[%s1 + $0x90] sm:$0xff]
  %v47 = vld [vmem:[%s1 + $0x98] sm:$0xff]
  %v48 = vld [vmem:[%s1 + $0xa0] sm:$0xff]
  %v49 = vld [vmem:[%s1 + $0xa8] sm:$0xff]
  %v50 = vld [vmem:[%s1 + $0xb0] sm:$0xff]
  %v51 = vld [vmem:[%s1 + $0xb8] sm:$0xff]
  %v52 = vld [vmem:[%s1 + $0xc0] sm:$0xff]
  %v53 = vld [vmem:[%s1 + $0xc8] sm:$0xff]
  %v54 = vld [vmem:[%s1 + $0xd0] sm:$0xff]
  %v55 = vld [vmem:[%s1 + $0xd8] sm:$0xff]
  %v56 = vld [vmem:[%s1 + $0xe0] sm:$0xff]
  %v57 = vld [vmem:[%s1 + $0xe8] sm:$0xff]
  %v58 = vld [vmem:[%s1 + $0xf0] sm:$0xff]
  %v59 = vld [vmem:[%s1 + $0xf8] sm:$0xff]
  %vm60 = vcmask 261120
  %v62 = vsel %vm60, %v22, 0
  %v65 = vsel %vm60, %v23, 0
  %v68 = vsel %vm60, %v24, 0
  %70 = vmatprep.subr.mxu0 0.0
  %71 = vmatpush1.msra.mxu0 %v28
  %72 = vmatprep.subr.mxu0 0.0
  %73 = vmatpush1.msra.mxu0 %v29
  %74 = vmatprep.subr.mxu0 0.0
  %75 = vmatpush1.msra.mxu0 %v30
  %76 = vmatprep.subr.mxu0 0.0
  %77 = vmatpush1.msra.mxu0 %v31
  %78 = vmatprep.subr.mxu0 0.0
  %79 = vmatpush1.msra.mxu0 0.0
  %80 = vmatprep.subr.mxu0 0.0
  %81 = vmatpush1.msra.mxu0 0.0
  %82 = vmatprep.subr.mxu0 0.0
  %83 = vmatpush1.msra.mxu0 0.0
  %84 = vmatprep.subr.mxu0 0.0
  %85 = vmatpush1.msra.mxu0 0.0
  %86 = vmatprep.subr.mxu0 0.0
  %87 = vmatpush1.msra.mxu0 0.0
  %88 = vmatprep.subr.mxu0 0.0
  %89 = vmatpush1.msra.mxu0 0.0
  %90 = vmatprep.subr.mxu0 0.0
  %91 = vmatpush1.msra.mxu0 0.0
  %92 = vmatprep.subr.mxu0 0.0
  %93 = vmatpush1.msra.mxu0 0.0
  %94 = vmatprep.subr.mxu0 0.0
  %95 = vmatpush1.msra.mxu0 0.0
  %96 = vmatprep.subr.mxu0 0.0
  %97 = vmatpush1.msra.mxu0 0.0
  %98 = vmatprep.subr.mxu0 0.0
  %99 = vmatpush1.msra.mxu0 0.0
  %100 = vmatprep.subr.mxu0 0.0
  %101 = vmatpush1.msra.mxu0 0.0
  %102 = vmatprep.subr.mxu0 0.0
  %103 = vmatpush1.msra.mxu0 0.0
  %104 = vmatprep.subr.mxu0 0.0
  %105 = vmatpush1.msra.mxu0 0.0
  %106 = vmatprep.subr.mxu0 0.0
  %107 = vmatpush1.msra.mxu0 0.0
  %108 = vmatprep.subr.mxu0 0.0
  %109 = vmatpush1.msra.mxu0 0.0
  %110 = vmatprep.subr.mxu0 0.0
  %111 = vmatpush1.msra.mxu0 0.0
  %112 = vmatprep.subr.mxu0 0.0
  %113 = vmatpush1.msra.mxu0 0.0
  %114 = vmatprep.subr.mxu0 0.0
  %115 = vmatpush1.msra.mxu0 0.0
  %116 = vmatprep.subr.mxu0 0.0
  %117 = vmatpush1.msra.mxu0 0.0
  %118 = vmatprep.subr.mxu0 0.0
  %119 = vmatpush1.msra.mxu0 0.0
  %120 = vmatprep.subr.mxu0 0.0
  %121 = vmatpush1.msra.mxu0 0.0
  %122 = vmatprep.subr.mxu0 0.0
  %123 = vmatpush1.msra.mxu0 0.0
  %124 = vmatprep.subr.mxu0 0.0
  %125 = vmatpush1.msra.mxu0 0.0
  %126 = vmatprep.subr.mxu0 0.0
  %127 = vmatpush1.msra.mxu0 0.0
  %128 = vmatprep.subr.mxu0 0.0
  %129 = vmatpush1.msra.mxu0 0.0
  %130 = vmatprep.subr.mxu0 0.0
  %131 = vmatpush1.msra.mxu0 0.0
  %132 = vmatprep.subr.mxu0 0.0
  %133 = vmatpush1.msra.mxu0 0.0
  %134 = vmatprep.mubr.f32.mxu0 0.0
  %135 = vmatmul.mubr.f32.gmra.mrb[0].mxu0 %v62
  %v136 = vpop.f32.mrb[0].mxu0
  %v137 = vadd.f32 0.0, %v136
  %v138 = vpop.f32.mrb[0].mxu0
  %139 = vmatprep.mubr.f32.mxu0 0.0
  %140 = vmatmul.mubr.f32.gmra.mrb[0].mxu0 %v65
  %v141 = vpop.f32.mrb[0].mxu0
  %v142 = vadd.f32 0.0, %v141
  %v143 = vpop.f32.mrb[0].mxu0
  %144 = vmatprep.mubr.f32.mxu0 0.0
  %145 = vmatmul.mubr.f32.gmra.mrb[0].mxu0 %v68
  %v146 = vpop.f32.mrb[0].mxu0
  %v147 = vadd.f32 0.0, %v146
  %v148 = vpop.f32.mrb[0].mxu0
  %149 = vdwg.mxu0
  %150 = vmatprep.subr.mxu0 0.0
  %151 = vmatpush1.msra.mxu0 %v32
  %152 = vmatprep.subr.mxu0 0.0
  %153 = vmatpush1.msra.mxu0 %v33
  %154 = vmatprep.subr.mxu0 0.0
  %155 = vmatpush1.msra.mxu0 %v34
  %156 = vmatprep.subr.mxu0 0.0
  %157 = vmatpush1.msra.mxu0 %v35
  %158 = vmatprep.subr.mxu0 0.0
  %159 = vmatpush1.msra.mxu0 0.0
  %160 = vmatprep.subr.mxu0 0.0
  %161 = vmatpush1.msra.mxu0 0.0
  %162 = vmatprep.subr.mxu0 0.0
  %163 = vmatpush1.msra.mxu0 0.0
  %164 = vmatprep.subr.mxu0 0.0
  %165 = vmatpush1.msra.mxu0 0.0
  %166 = vmatprep.subr.mxu0 0.0
  %167 = vmatpush1.msra.mxu0 0.0
  %168 = vmatprep.subr.mxu0 0.0
  %169 = vmatpush1.msra.mxu0 0.0
  %170 = vmatprep.subr.mxu0 0.0
  %171 = vmatpush1.msra.mxu0 0.0
  %172 = vmatprep.subr.mxu0 0.0
  %173 = vmatpush1.msra.mxu0 0.0
  %174 = vmatprep.subr.mxu0 0.0
  %175 = vmatpush1.msra.mxu0 0.0
  %176 = vmatprep.subr.mxu0 0.0
  %177 = vmatpush1.msra.mxu0 0.0
  %178 = vmatprep.subr.mxu0 0.0
  %179 = vmatpush1.msra.mxu0 0.0
  %180 = vmatprep.subr.mxu0 0.0
  %181 = vmatpush1.msra.mxu0 0.0
  %182 = vmatprep.subr.mxu0 0.0
  %183 = vmatpush1.msra.mxu0 0.0
  %184 = vmatprep.subr.mxu0 0.0
  %185 = vmatpush1.msra.mxu0 0.0
  %186 = vmatprep.subr.mxu0 0.0
  %187 = vmatpush1.msra.mxu0 0.0
  %188 = vmatprep.subr.mxu0 0.0
  %189 = vmatpush1.msra.mxu0 0.0
  %190 = vmatprep.subr.mxu0 0.0
  %191 = vmatpush1.msra.mxu0 0.0
  %192 = vmatprep.subr.mxu0 0.0
  %193 = vmatpush1.msra.mxu0 0.0
  %194 = vmatprep.subr.mxu0 0.0
  %195 = vmatpush1.msra.mxu0 0.0
  %196 = vmatprep.subr.mxu0 0.0
  %197 = vmatpush1.msra.mxu0 0.0
  %198 = vmatprep.subr.mxu0 0.0
  %199 = vmatpush1.msra.mxu0 0.0
  %200 = vmatprep.subr.mxu0 0.0
  %201 = vmatpush1.msra.mxu0 0.0
  %202 = vmatprep.subr.mxu0 0.0
  %203 = vmatpush1.msra.mxu0 0.0
  %204 = vmatprep.subr.mxu0 0.0
  %205 = vmatpush1.msra.mxu0 0.0
  %206 = vmatprep.subr.mxu0 0.0
  %207 = vmatpush1.msra.mxu0 0.0
  %208 = vmatprep.subr.mxu0 0.0
  %209 = vmatpush1.msra.mxu0 0.0
  %210 = vmatprep.subr.mxu0 0.0
  %211 = vmatpush1.msra.mxu0 0.0
  %212 = vmatprep.subr.mxu0 0.0
  %213 = vmatpush1.msra.mxu0 0.0
  %214 = vmatprep.mubr.f32.mxu0 0.0
  %215 = vmatmul.mubr.f32.gmra.mrb[0].mxu0 %v62
  %v216 = vpop.f32.mrb[0].mxu0
  %v217 = vadd.f32 0.0, %v216
  %v218 = vpop.f32.mrb[0].mxu0
  %219 = vmatprep.mubr.f32.mxu0 0.0
  %220 = vmatmul.mubr.f32.gmra.mrb[0].mxu0 %v65
  %v221 = vpop.f32.mrb[0].mxu0
  %v222 = vadd.f32 0.0, %v221
  %v223 = vpop.f32.mrb[0].mxu0
  %224 = vmatprep.mubr.f32.mxu0 0.0
  %225 = vmatmul.mubr.f32.gmra.mrb[0].mxu0 %v68
  %v226 = vpop.f32.mrb[0].mxu0
  %v227 = vadd.f32 0.0, %v226
  %v228 = vpop.f32.mrb[0].mxu0
  %229 = vdwg.mxu0
  %v231 = vsel %vm60, %v25, 0
  %v234 = vsel %vm60, %v26, 0
  %v237 = vsel %vm60, %v27, 0
  %239 = vmatprep.subr.mxu0 0.0
  %240 = vmatpush1.msra.mxu0 %v36
  %241 = vmatprep.subr.mxu0 0.0
  %242 = vmatpush1.msra.mxu0 %v37
  %243 = vmatprep.subr.mxu0 0.0
  %244 = vmatpush1.msra.mxu0 %v38
  %245 = vmatprep.subr.mxu0 0.0
  %246 = vmatpush1.msra.mxu0 %v39
  %247 = vmatprep.subr.mxu0 0.0
  %248 = vmatpush1.msra.mxu0 0.0
  %249 = vmatprep.subr.mxu0 0.0
  %250 = vmatpush1.msra.mxu0 0.0
  %251 = vmatprep.subr.mxu0 0.0
  %252 = vmatpush1.msra.mxu0 0.0
  %253 = vmatprep.subr.mxu0 0.0
  %254 = vmatpush1.msra.mxu0 0.0
  %255 = vmatprep.subr.mxu0 0.0
  %256 = vmatpush1.msra.mxu0 0.0
  %257 = vmatprep.subr.mxu0 0.0
  %258 = vmatpush1.msra.mxu0 0.0
  %259 = vmatprep.subr.mxu0 0.0
  %260 = vmatpush1.msra.mxu0 0.0
  %261 = vmatprep.subr.mxu0 0.0
  %262 = vmatpush1.msra.mxu0 0.0
  %263 = vmatprep.subr.mxu0 0.0
  %264 = vmatpush1.msra.mxu0 0.0
  %265 = vmatprep.subr.mxu0 0.0
  %266 = vmatpush1.msra.mxu0 0.0
  %267 = vmatprep.subr.mxu0 0.0
  %268 = vmatpush1.msra.mxu0 0.0
  %269 = vmatprep.subr.mxu0 0.0
  %270 = vmatpush1.msra.mxu0 0.0
  %271 = vmatprep.subr.mxu0 0.0
  %272 = vmatpush1.msra.mxu0 0.0
  %273 = vmatprep.subr.mxu0 0.0
  %274 = vmatpush1.msra.mxu0 0.0
  %275 = vmatprep.subr.mxu0 0.0
  %276 = vmatpush1.msra.mxu0 0.0
  %277 = vmatprep.subr.mxu0 0.0
  %278 = vmatpush1.msra.mxu0 0.0
  %279 = vmatprep.subr.mxu0 0.0
  %280 = vmatpush1.msra.mxu0 0.0
  %281 = vmatprep.subr.mxu0 0.0
  %282 = vmatpush1.msra.mxu0 0.0
  %283 = vmatprep.subr.mxu0 0.0
  %284 = vmatpush1.msra.mxu0 0.0
  %285 = vmatprep.subr.mxu0 0.0
  %286 = vmatpush1.msra.mxu0 0.0
  %287 = vmatprep.subr.mxu0 0.0
  %288 = vmatpush1.msra.mxu0 0.0
  %289 = vmatprep.subr.mxu0 0.0
  %290 = vmatpush1.msra.mxu0 0.0
  %291 = vmatprep.subr.mxu0 0.0
  %292 = vmatpush1.msra.mxu0 0.0
  %293 = vmatprep.subr.mxu0 0.0
  %294 = vmatpush1.msra.mxu0 0.0
  %295 = vmatprep.subr.mxu0 0.0
  %296 = vmatpush1.msra.mxu0 0.0
  %297 = vmatprep.subr.mxu0 0.0
  %298 = vmatpush1.msra.mxu0 0.0
  %299 = vmatprep.subr.mxu0 0.0
  %300 = vmatpush1.msra.mxu0 0.0
  %301 = vmatprep.subr.mxu0 0.0
  %302 = vmatpush1.msra.mxu0 0.0
  %303 = vmatprep.mubr.f32.mxu0 0.0
  %304 = vmatmul.mubr.f32.gmra.mrb[0].mxu0 %v231
  %v305 = vpop.f32.mrb[0].mxu0
  %v306 = vadd.f32 0.0, %v305
  %v307 = vpop.f32.mrb[0].mxu0
  %308 = vmatprep.mubr.f32.mxu0 0.0
  %309 = vmatmul.mubr.f32.gmra.mrb[0].mxu0 %v234
  %v310 = vpop.f32.mrb[0].mxu0
  %v311 = vadd.f32 0.0, %v310
  %v312 = vpop.f32.mrb[0].mxu0
  %313 = vmatprep.mubr.f32.mxu0 0.0
  %314 = vmatmul.mubr.f32.gmra.mrb[0].mxu0 %v237
  %v315 = vpop.f32.mrb[0].mxu0
  %v316 = vadd.f32 0.0, %v315
  %v317 = vpop.f32.mrb[0].mxu0
  %318 = vdwg.mxu0
  %319 = vmatprep.subr.mxu0 0.0
  %320 = vmatpush1.msra.mxu0 %v40
  %321 = vmatprep.subr.mxu0 0.0
  %322 = vmatpush1.msra.mxu0 %v41
  %323 = vmatprep.subr.mxu0 0.0
  %324 = vmatpush1.msra.mxu0 %v42
  %325 = vmatprep.subr.mxu0 0.0
  %326 = vmatpush1.msra.mxu0 %v43
  %327 = vmatprep.subr.mxu0 0.0
  %328 = vmatpush1.msra.mxu0 0.0
  %329 = vmatprep.subr.mxu0 0.0
  %330 = vmatpush1.msra.mxu0 0.0
  %331 = vmatprep.subr.mxu0 0.0
  %332 = vmatpush1.msra.mxu0 0.0
  %333 = vmatprep.subr.mxu0 0.0
  %334 = vmatpush1.msra.mxu0 0.0
  %335 = vmatprep.subr.mxu0 0.0
  %336 = vmatpush1.msra.mxu0 0.0
  %337 = vmatprep.subr.mxu0 0.0
  %338 = vmatpush1.msra.mxu0 0.0
  %339 = vmatprep.subr.mxu0 0.0
  %340 = vmatpush1.msra.mxu0 0.0
  %341 = vmatprep.subr.mxu0 0.0
  %342 = vmatpush1.msra.mxu0 0.0
  %343 = vmatprep.subr.mxu0 0.0
  %344 = vmatpush1.msra.mxu0 0.0
  %345 = vmatprep.subr.mxu0 0.0
  %346 = vmatpush1.msra.mxu0 0.0
  %347 = vmatprep.subr.mxu0 0.0
  %348 = vmatpush1.msra.mxu0 0.0
  %349 = vmatprep.subr.mxu0 0.0
  %350 = vmatpush1.msra.mxu0 0.0
  %351 = vmatprep.subr.mxu0 0.0
  %352 = vmatpush1.msra.mxu0 0.0
  %353 = vmatprep.subr.mxu0 0.0
  %354 = vmatpush1.msra.mxu0 0.0
  %355 = vmatprep.subr.mxu0 0.0
  %356 = vmatpush1.msra.mxu0 0.0
  %357 = vmatprep.subr.mxu0 0.0
  %358 = vmatpush1.msra.mxu0 0.0
  %359 = vmatprep.subr.mxu0 0.0
  %360 = vmatpush1.msra.mxu0 0.0
  %361 = vmatprep.subr.mxu0 0.0
  %362 = vmatpush1.msra.mxu0 0.0
  %363 = vmatprep.subr.mxu0 0.0
  %364 = vmatpush1.msra.mxu0 0.0
  %365 = vmatprep.subr.mxu0 0.0
  %366 = vmatpush1.msra.mxu0 0.0
  %367 = vmatprep.subr.mxu0 0.0
  %368 = vmatpush1.msra.mxu0 0.0
  %369 = vmatprep.subr.mxu0 0.0
  %370 = vmatpush1.msra.mxu0 0.0
  %371 = vmatprep.subr.mxu0 0.0
  %372 = vmatpush1.msra.mxu0 0.0
  %373 = vmatprep.subr.mxu0 0.0
  %374 = vmatpush1.msra.mxu0 0.0
  %375 = vmatprep.subr.mxu0 0.0
  %376 = vmatpush1.msra.mxu0 0.0
  %377 = vmatprep.subr.mxu0 0.0
  %378 = vmatpush1.msra.mxu0 0.0
  %379 = vmatprep.subr.mxu0 0.0
  %380 = vmatpush1.msra.mxu0 0.0
  %381 = vmatprep.subr.mxu0 0.0
  %382 = vmatpush1.msra.mxu0 0.0
  %383 = vmatprep.mubr.f32.mxu0 0.0
  %384 = vmatmul.mubr.f32.gmra.mrb[0].mxu0 %v231
  %v385 = vpop.f32.mrb[0].mxu0
  %v386 = vadd.f32 0.0, %v385
  %v387 = vpop.f32.mrb[0].mxu0
  %388 = vmatprep.mubr.f32.mxu0 0.0
  %389 = vmatmul.mubr.f32.gmra.mrb[0].mxu0 %v234
  %v390 = vpop.f32.mrb[0].mxu0
  %v391 = vadd.f32 0.0, %v390
  %v392 = vpop.f32.mrb[0].mxu0
  %393 = vmatprep.mubr.f32.mxu0 0.0
  %394 = vmatmul.mubr.f32.gmra.mrb[0].mxu0 %v237
  %v395 = vpop.f32.mrb[0].mxu0
  %v396 = vadd.f32 0.0, %v395
  %v397 = vpop.f32.mrb[0].mxu0
  %398 = vdwg.mxu0
  %399 = vmatprep.subr.mxu0 0.0
  %400 = vmatpush1.msra.mxu0 %v44
  %401 = vmatprep.subr.mxu0 0.0
  %402 = vmatpush1.msra.mxu0 %v45
  %403 = vmatprep.subr.mxu0 0.0
  %404 = vmatpush1.msra.mxu0 %v46
  %405 = vmatprep.subr.mxu0 0.0
  %406 = vmatpush1.msra.mxu0 %v47
  %407 = vmatprep.subr.mxu0 0.0
  %408 = vmatpush1.msra.mxu0 0.0
  %409 = vmatprep.subr.mxu0 0.0
  %410 = vmatpush1.msra.mxu0 0.0
  %411 = vmatprep.subr.mxu0 0.0
  %412 = vmatpush1.msra.mxu0 0.0
  %413 = vmatprep.subr.mxu0 0.0
  %414 = vmatpush1.msra.mxu0 0.0
  %415 = vmatprep.subr.mxu0 0.0
  %416 = vmatpush1.msra.mxu0 0.0
  %417 = vmatprep.subr.mxu0 0.0
  %418 = vmatpush1.msra.mxu0 0.0
  %419 = vmatprep.subr.mxu0 0.0
  %420 = vmatpush1.msra.mxu0 0.0
  %421 = vmatprep.subr.mxu0 0.0
  %422 = vmatpush1.msra.mxu0 0.0
  %423 = vmatprep.subr.mxu0 0.0
  %424 = vmatpush1.msra.mxu0 0.0
  %425 = vmatprep.subr.mxu0 0.0
  %426 = vmatpush1.msra.mxu0 0.0
  %427 = vmatprep.subr.mxu0 0.0
  %428 = vmatpush1.msra.mxu0 0.0
  %429 = vmatprep.subr.mxu0 0.0
  %430 = vmatpush1.msra.mxu0 0.0
  %431 = vmatprep.subr.mxu0 0.0
  %432 = vmatpush1.msra.mxu0 0.0
  %433 = vmatprep.subr.mxu0 0.0
  %434 = vmatpush1.msra.mxu0 0.0
  %435 = vmatprep.subr.mxu0 0.0
  %436 = vmatpush1.msra.mxu0 0.0
  %437 = vmatprep.subr.mxu0 0.0
  %438 = vmatpush1.msra.mxu0 0.0
  %439 = vmatprep.subr.mxu0 0.0
  %440 = vmatpush1.msra.mxu0 0.0
  %441 = vmatprep.subr.mxu0 0.0
  %442 = vmatpush1.msra.mxu0 0.0
  %443 = vmatprep.subr.mxu0 0.0
  %444 = vmatpush1.msra.mxu0 0.0
  %445 = vmatprep.subr.mxu0 0.0
  %446 = vmatpush1.msra.mxu0 0.0
  %447 = vmatprep.subr.mxu0 0.0
  %448 = vmatpush1.msra.mxu0 0.0
  %449 = vmatprep.subr.mxu0 0.0
  %450 = vmatpush1.msra.mxu0 0.0
  %451 = vmatprep.subr.mxu0 0.0
  %452 = vmatpush1.msra.mxu0 0.0
  %453 = vmatprep.subr.mxu0 0.0
  %454 = vmatpush1.msra.mxu0 0.0
  %455 = vmatprep.subr.mxu0 0.0
  %456 = vmatpush1.msra.mxu0 0.0
  %457 = vmatprep.subr.mxu0 0.0
  %458 = vmatpush1.msra.mxu0 0.0
  %459 = vmatprep.subr.mxu0 0.0
  %460 = vmatpush1.msra.mxu0 0.0
  %461 = vmatprep.subr.mxu0 0.0
  %462 = vmatpush1.msra.mxu0 0.0
  %463 = vmatprep.mubr.f32.mxu0 0.0
  %464 = vmatmul.mubr.f32.gmra.mrb[0].mxu0 %v62
  %v465 = vpop.f32.mrb[0].mxu0
  %v466 = vadd.f32 0.0, %v465
  %v467 = vpop.f32.mrb[0].mxu0
  %468 = vmatprep.mubr.f32.mxu0 0.0
  %469 = vmatmul.mubr.f32.gmra.mrb[0].mxu0 %v65
  %v470 = vpop.f32.mrb[0].mxu0
  %v471 = vadd.f32 0.0, %v470
  %v472 = vpop.f32.mrb[0].mxu0
  %473 = vmatprep.mubr.f32.mxu0 0.0
  %474 = vmatmul.mubr.f32.gmra.mrb[0].mxu0 %v68
  %v475 = vpop.f32.mrb[0].mxu0
  %v476 = vadd.f32 0.0, %v475
  %v477 = vpop.f32.mrb[0].mxu0
  %478 = vdwg.mxu0
  %479 = vmatprep.subr.mxu0 0.0
  %480 = vmatpush1.msra.mxu0 %v48
  %481 = vmatprep.subr.mxu0 0.0
  %482 = vmatpush1.msra.mxu0 %v49
  %483 = vmatprep.subr.mxu0 0.0
  %484 = vmatpush1.msra.mxu0 %v50
  %485 = vmatprep.subr.mxu0 0.0
  %486 = vmatpush1.msra.mxu0 %v51
  %487 = vmatprep.subr.mxu0 0.0
  %488 = vmatpush1.msra.mxu0 0.0
  %489 = vmatprep.subr.mxu0 0.0
  %490 = vmatpush1.msra.mxu0 0.0
  %491 = vmatprep.subr.mxu0 0.0
  %492 = vmatpush1.msra.mxu0 0.0
  %493 = vmatprep.subr.mxu0 0.0
  %494 = vmatpush1.msra.mxu0 0.0
  %495 = vmatprep.subr.mxu0 0.0
  %496 = vmatpush1.msra.mxu0 0.0
  %497 = vmatprep.subr.mxu0 0.0
  %498 = vmatpush1.msra.mxu0 0.0
  %499 = vmatprep.subr.mxu0 0.0
  %500 = vmatpush1.msra.mxu0 0.0
  %501 = vmatprep.subr.mxu0 0.0
  %502 = vmatpush1.msra.mxu0 0.0
  %503 = vmatprep.subr.mxu0 0.0
  %504 = vmatpush1.msra.mxu0 0.0
  %505 = vmatprep.subr.mxu0 0.0
  %506 = vmatpush1.msra.mxu0 0.0
  %507 = vmatprep.subr.mxu0 0.0
  %508 = vmatpush1.msra.mxu0 0.0
  %509 = vmatprep.subr.mxu0 0.0
  %510 = vmatpush1.msra.mxu0 0.0
  %511 = vmatprep.subr.mxu0 0.0
  %512 = vmatpush1.msra.mxu0 0.0
  %513 = vmatprep.subr.mxu0 0.0
  %514 = vmatpush1.msra.mxu0 0.0
  %515 = vmatprep.subr.mxu0 0.0
  %516 = vmatpush1.msra.mxu0 0.0
  %517 = vmatprep.subr.mxu0 0.0
  %518 = vmatpush1.msra.mxu0 0.0
  %519 = vmatprep.subr.mxu0 0.0
  %520 = vmatpush1.msra.mxu0 0.0
  %521 = vmatprep.subr.mxu0 0.0
  %522 = vmatpush1.msra.mxu0 0.0
  %523 = vmatprep.subr.mxu0 0.0
  %524 = vmatpush1.msra.mxu0 0.0
  %525 = vmatprep.subr.mxu0 0.0
  %526 = vmatpush1.msra.mxu0 0.0
  %527 = vmatprep.subr.mxu0 0.0
  %528 = vmatpush1.msra.mxu0 0.0
  %529 = vmatprep.subr.mxu0 0.0
  %530 = vmatpush1.msra.mxu0 0.0
  %531 = vmatprep.subr.mxu0 0.0
  %532 = vmatpush1.msra.mxu0 0.0
  %533 = vmatprep.subr.mxu0 0.0
  %534 = vmatpush1.msra.mxu0 0.0
  %535 = vmatprep.subr.mxu0 0.0
  %536 = vmatpush1.msra.mxu0 0.0
  %537 = vmatprep.subr.mxu0 0.0
  %538 = vmatpush1.msra.mxu0 0.0
  %539 = vmatprep.subr.mxu0 0.0
  %540 = vmatpush1.msra.mxu0 0.0
  %541 = vmatprep.subr.mxu0 0.0
  %542 = vmatpush1.msra.mxu0 0.0
  %543 = vmatprep.mubr.f32.mxu0 0.0
  %544 = vmatmul.mubr.f32.gmra.mrb[0].mxu0 %v62
  %v545 = vpop.f32.mrb[0].mxu0
  %v546 = vadd.f32 0.0, %v545
  %v547 = vpop.f32.mrb[0].mxu0
  %548 = vmatprep.mubr.f32.mxu0 0.0
  %549 = vmatmul.mubr.f32.gmra.mrb[0].mxu0 %v65
  %v550 = vpop.f32.mrb[0].mxu0
  %v551 = vadd.f32 0.0, %v550
  %v552 = vpop.f32.mrb[0].mxu0
  %553 = vmatprep.mubr.f32.mxu0 0.0
  %554 = vmatmul.mubr.f32.gmra.mrb[0].mxu0 %v68
  %v555 = vpop.f32.mrb[0].mxu0
  %v556 = vadd.f32 0.0, %v555
  %v557 = vpop.f32.mrb[0].mxu0
  %558 = vdwg.mxu0
  %559 = vmatprep.subr.mxu0 0.0
  %560 = vmatpush1.msra.mxu0 %v52
  %561 = vmatprep.subr.mxu0 0.0
  %562 = vmatpush1.msra.mxu0 %v53
  %563 = vmatprep.subr.mxu0 0.0
  %564 = vmatpush1.msra.mxu0 %v54
  %565 = vmatprep.subr.mxu0 0.0
  %566 = vmatpush1.msra.mxu0 %v55
  %567 = vmatprep.subr.mxu0 0.0
  %568 = vmatpush1.msra.mxu0 0.0
  %569 = vmatprep.subr.mxu0 0.0
  %570 = vmatpush1.msra.mxu0 0.0
  %571 = vmatprep.subr.mxu0 0.0
  %572 = vmatpush1.msra.mxu0 0.0
  %573 = vmatprep.subr.mxu0 0.0
  %574 = vmatpush1.msra.mxu0 0.0
  %575 = vmatprep.subr.mxu0 0.0
  %576 = vmatpush1.msra.mxu0 0.0
  %577 = vmatprep.subr.mxu0 0.0
  %578 = vmatpush1.msra.mxu0 0.0
  %579 = vmatprep.subr.mxu0 0.0
  %580 = vmatpush1.msra.mxu0 0.0
  %581 = vmatprep.subr.mxu0 0.0
  %582 = vmatpush1.msra.mxu0 0.0
  %583 = vmatprep.subr.mxu0 0.0
  %584 = vmatpush1.msra.mxu0 0.0
  %585 = vmatprep.subr.mxu0 0.0
  %586 = vmatpush1.msra.mxu0 0.0
  %587 = vmatprep.subr.mxu0 0.0
  %588 = vmatpush1.msra.mxu0 0.0
  %589 = vmatprep.subr.mxu0 0.0
  %590 = vmatpush1.msra.mxu0 0.0
  %591 = vmatprep.subr.mxu0 0.0
  %592 = vmatpush1.msra.mxu0 0.0
  %593 = vmatprep.subr.mxu0 0.0
  %594 = vmatpush1.msra.mxu0 0.0
  %595 = vmatprep.subr.mxu0 0.0
  %596 = vmatpush1.msra.mxu0 0.0
  %597 = vmatprep.subr.mxu0 0.0
  %598 = vmatpush1.msra.mxu0 0.0
  %599 = vmatprep.subr.mxu0 0.0
  %600 = vmatpush1.msra.mxu0 0.0
  %601 = vmatprep.subr.mxu0 0.0
  %602 = vmatpush1.msra.mxu0 0.0
  %603 = vmatprep.subr.mxu0 0.0
  %604 = vmatpush1.msra.mxu0 0.0
  %605 = vmatprep.subr.mxu0 0.0
  %606 = vmatpush1.msra.mxu0 0.0
  %607 = vmatprep.subr.mxu0 0.0
  %608 = vmatpush1.msra.mxu0 0.0
  %609 = vmatprep.subr.mxu0 0.0
  %610 = vmatpush1.msra.mxu0 0.0
  %611 = vmatprep.subr.mxu0 0.0
  %612 = vmatpush1.msra.mxu0 0.0
  %613 = vmatprep.subr.mxu0 0.0
  %614 = vmatpush1.msra.mxu0 0.0
  %615 = vmatprep.subr.mxu0 0.0
  %616 = vmatpush1.msra.mxu0 0.0
  %617 = vmatprep.subr.mxu0 0.0
  %618 = vmatpush1.msra.mxu0 0.0
  %619 = vmatprep.subr.mxu0 0.0
  %620 = vmatpush1.msra.mxu0 0.0
  %621 = vmatprep.subr.mxu0 0.0
  %622 = vmatpush1.msra.mxu0 0.0
  %623 = vmatprep.mubr.f32.mxu0 0.0
  %624 = vmatmul.mubr.f32.gmra.mrb[0].mxu0 %v231
  %v625 = vpop.f32.mrb[0].mxu0
  %v626 = vadd.f32 0.0, %v625
  %v627 = vpop.f32.mrb[0].mxu0
  %628 = vmatprep.mubr.f32.mxu0 0.0
  %629 = vmatmul.mubr.f32.gmra.mrb[0].mxu0 %v234
  %v630 = vpop.f32.mrb[0].mxu0
  %v631 = vadd.f32 0.0, %v630
  %v632 = vpop.f32.mrb[0].mxu0
  %633 = vmatprep.mubr.f32.mxu0 0.0
  %634 = vmatmul.mubr.f32.gmra.mrb[0].mxu0 %v237
  %v635 = vpop.f32.mrb[0].mxu0
  %v636 = vadd.f32 0.0, %v635
  %v637 = vpop.f32.mrb[0].mxu0
  %638 = vdwg.mxu0
  %639 = vmatprep.subr.mxu0 0.0
  %640 = vmatpush1.msra.mxu0 %v56
  %641 = vmatprep.subr.mxu0 0.0
  %642 = vmatpush1.msra.mxu0 %v57
  %643 = vmatprep.subr.mxu0 0.0
  %644 = vmatpush1.msra.mxu0 %v58
  %645 = vmatprep.subr.mxu0 0.0
  %646 = vmatpush1.msra.mxu0 %v59
  %647 = vmatprep.subr.mxu0 0.0
  %648 = vmatpush1.msra.mxu0 0.0
  %649 = vmatprep.subr.mxu0 0.0
  %650 = vmatpush1.msra.mxu0 0.0
  %651 = vmatprep.subr.mxu0 0.0
  %652 = vmatpush1.msra.mxu0 0.0
  %653 = vmatprep.subr.mxu0 0.0
  %654 = vmatpush1.msra.mxu0 0.0
  %655 = vmatprep.subr.mxu0 0.0
  %656 = vmatpush1.msra.mxu0 0.0
  %657 = vmatprep.subr.mxu0 0.0
  %658 = vmatpush1.msra.mxu0 0.0
  %659 = vmatprep.subr.mxu0 0.0
  %660 = vmatpush1.msra.mxu0 0.0
  %661 = vmatprep.subr.mxu0 0.0
  %662 = vmatpush1.msra.mxu0 0.0
  %663 = vmatprep.subr.mxu0 0.0
  %664 = vmatpush1.msra.mxu0 0.0
  %665 = vmatprep.subr.mxu0 0.0
  %666 = vmatpush1.msra.mxu0 0.0
  %667 = vmatprep.subr.mxu0 0.0
  %668 = vmatpush1.msra.mxu0 0.0
  %669 = vmatprep.subr.mxu0 0.0
  %670 = vmatpush1.msra.mxu0 0.0
  %671 = vmatprep.subr.mxu0 0.0
  %672 = vmatpush1.msra.mxu0 0.0
  %673 = vmatprep.subr.mxu0 0.0
  %674 = vmatpush1.msra.mxu0 0.0
  %675 = vmatprep.subr.mxu0 0.0
  %676 = vmatpush1.msra.mxu0 0.0
  %677 = vmatprep.subr.mxu0 0.0
  %678 = vmatpush1.msra.mxu0 0.0
  %679 = vmatprep.subr.mxu0 0.0
  %680 = vmatpush1.msra.mxu0 0.0
  %681 = vmatprep.subr.mxu0 0.0
  %682 = vmatpush1.msra.mxu0 0.0
  %683 = vmatprep.subr.mxu0 0.0
  %684 = vmatpush1.msra.mxu0 0.0
  %685 = vmatprep.subr.mxu0 0.0
  %686 = vmatpush1.msra.mxu0 0.0
  %687 = vmatprep.subr.mxu0 0.0
  %688 = vmatpush1.msra.mxu0 0.0
  %689 = vmatprep.subr.mxu0 0.0
  %690 = vmatpush1.msra.mxu0 0.0
  %691 = vmatprep.subr.mxu0 0.0
  %692 = vmatpush1.msra.mxu0 0.0
  %693 = vmatprep.subr.mxu0 0.0
  %694 = vmatpush1.msra.mxu0 0.0
  %695 = vmatprep.subr.mxu0 0.0
  %696 = vmatpush1.msra.mxu0 0.0
  %697 = vmatprep.subr.mxu0 0.0
  %698 = vmatpush1.msra.mxu0 0.0
  %699 = vmatprep.subr.mxu0 0.0
  %700 = vmatpush1.msra.mxu0 0.0
  %701 = vmatprep.subr.mxu0 0.0
  %702 = vmatpush1.msra.mxu0 0.0
  %703 = vmatprep.mubr.f32.mxu0 0.0
  %704 = vmatmul.mubr.f32.gmra.mrb[0].mxu0 %v231
  %v705 = vpop.f32.mrb[0].mxu0
  %v706 = vadd.f32 0.0, %v705
  %v707 = vpop.f32.mrb[0].mxu0
  %708 = vmatprep.mubr.f32.mxu0 0.0
  %709 = vmatmul.mubr.f32.gmra.mrb[0].mxu0 %v234
  %v710 = vpop.f32.mrb[0].mxu0
  %v711 = vadd.f32 0.0, %v710
  %v712 = vpop.f32.mrb[0].mxu0
  %713 = vmatprep.mubr.f32.mxu0 0.0
  %714 = vmatmul.mubr.f32.gmra.mrb[0].mxu0 %v237
  %v715 = vpop.f32.mrb[0].mxu0
  %v716 = vadd.f32 0.0, %v715
  %v717 = vpop.f32.mrb[0].mxu0
  %718 = vdwg.mxu0
  %722 = vrot.lane.b32.xlu0 %v137, 120
  %v723 = vpop.permute.xlu0 %722
  %724 = vrot.lane.b32.xlu0 %v142, 120
  %v725 = vpop.permute.xlu0 %724
  %726 = vrot.lane.b32.xlu0 %v147, 120
  %v727 = vpop.permute.xlu0 %726
  %vm728 = vcmask 64512
  %v729 = vsel %vm728, %v137, 0
  %v731 = vsel %vm728, %v142, 0
  %v733 = vsel %vm728, %v147, 0
  %v735 = vsel %vm728, %v723, 0
  %v737 = vsel %vm728, %v725, 0
  %v739 = vsel %vm728, %v727, 0
  %741 = vmatprep.subr.mxu0 0.0
  %742 = vmatpush1.xpose.msra.mxu0 %v735
  %743 = vmatprep.subr.mxu0 0.0
  %744 = vmatpush1.xpose.msra.mxu0 %v737
  %745 = vmatprep.subr.mxu0 0.0
  %746 = vmatpush1.xpose.msra.mxu0 %v739
  %747 = vmatprep.subr.mxu0 0.0
  %748 = vmatpush1.xpose.msra.mxu0 0.0
  %749 = vmatprep.subr.mxu0 0.0
  %750 = vmatpush1.xpose.msra.mxu0 0.0
  %751 = vmatprep.subr.mxu0 0.0
  %752 = vmatpush1.xpose.msra.mxu0 0.0
  %753 = vmatprep.subr.mxu0 0.0
  %754 = vmatpush1.xpose.msra.mxu0 0.0
  %755 = vmatprep.subr.mxu0 0.0
  %756 = vmatpush1.xpose.msra.mxu0 0.0
  %757 = vmatprep.subr.mxu0 0.0
  %758 = vmatpush1.xpose.msra.mxu0 0.0
  %759 = vmatprep.subr.mxu0 0.0
  %760 = vmatpush1.xpose.msra.mxu0 0.0
  %761 = vmatprep.subr.mxu0 0.0
  %762 = vmatpush1.xpose.msra.mxu0 0.0
  %763 = vmatprep.subr.mxu0 0.0
  %764 = vmatpush1.xpose.msra.mxu0 0.0
  %765 = vmatprep.subr.mxu0 0.0
  %766 = vmatpush1.xpose.msra.mxu0 0.0
  %767 = vmatprep.subr.mxu0 0.0
  %768 = vmatpush1.xpose.msra.mxu0 0.0
  %769 = vmatprep.subr.mxu0 0.0
  %770 = vmatpush1.xpose.msra.mxu0 0.0
  %771 = vmatprep.subr.mxu0 0.0
  %772 = vmatpush1.xpose.msra.mxu0 0.0
  %773 = vmatprep.subr.mxu0 0.0
  %774 = vmatpush1.xpose.msra.mxu0 0.0
  %775 = vmatprep.subr.mxu0 0.0
  %776 = vmatpush1.xpose.msra.mxu0 0.0
  %777 = vmatprep.subr.mxu0 0.0
  %778 = vmatpush1.xpose.msra.mxu0 0.0
  %779 = vmatprep.subr.mxu0 0.0
  %780 = vmatpush1.xpose.msra.mxu0 0.0
  %781 = vmatprep.subr.mxu0 0.0
  %782 = vmatpush1.xpose.msra.mxu0 0.0
  %783 = vmatprep.subr.mxu0 0.0
  %784 = vmatpush1.xpose.msra.mxu0 0.0
  %785 = vmatprep.subr.mxu0 0.0
  %786 = vmatpush1.xpose.msra.mxu0 0.0
  %787 = vmatprep.subr.mxu0 0.0
  %788 = vmatpush1.xpose.msra.mxu0 0.0
  %789 = vmatprep.subr.mxu0 0.0
  %790 = vmatpush1.xpose.msra.mxu0 0.0
  %791 = vmatprep.subr.mxu0 0.0
  %792 = vmatpush1.xpose.msra.mxu0 0.0
  %793 = vmatprep.subr.mxu0 0.0
  %794 = vmatpush1.xpose.msra.mxu0 0.0
  %795 = vmatprep.subr.mxu0 0.0
  %796 = vmatpush1.xpose.msra.mxu0 0.0
  %797 = vmatprep.subr.mxu0 0.0
  %798 = vmatpush1.xpose.msra.mxu0 0.0
  %799 = vmatprep.subr.mxu0 0.0
  %800 = vmatpush1.xpose.msra.mxu0 0.0
  %801 = vmatprep.subr.mxu0 0.0
  %802 = vmatpush1.xpose.msra.mxu0 0.0
  %803 = vmatprep.subr.mxu0 0.0
  %804 = vmatpush1.xpose.msra.mxu0 0.0
  %805 = vmatprep.mubr.f32.mxu0 0.0
  %806 = vmatmul.mubr.f32.gmra.mrb[0].mxu0 %v729
  %v807 = vpop.f32.mrb[0].mxu0
  %v808 = vadd.f32 0.0, %v807
  %v809 = vpop.f32.mrb[0].mxu0
  %810 = vmatprep.mubr.f32.mxu0 0.0
  %811 = vmatmul.mubr.f32.gmra.mrb[0].mxu0 %v731
  %v812 = vpop.f32.mrb[0].mxu0
  %v813 = vadd.f32 0.0, %v812
  %v814 = vpop.f32.mrb[0].mxu0
  %815 = vmatprep.mubr.f32.mxu0 0.0
  %816 = vmatmul.mubr.f32.gmra.mrb[0].mxu0 %v733
  %v817 = vpop.f32.mrb[0].mxu0
  %v818 = vadd.f32 0.0, %v817
  %v819 = vpop.f32.mrb[0].mxu0
  %820 = vdwg.mxu0
  %824 = vrot.lane.b32.xlu0 %v217, 120
  %v825 = vpop.permute.xlu0 %824
  %826 = vrot.lane.b32.xlu0 %v222, 120
  %v827 = vpop.permute.xlu0 %826
  %828 = vrot.lane.b32.xlu0 %v227, 120
  %v829 = vpop.permute.xlu0 %828
  %v830 = vsel %vm728, %v217, 0
  %v832 = vsel %vm728, %v222, 0
  %v834 = vsel %vm728, %v227, 0
  %v836 = vsel %vm728, %v825, 0
  %v838 = vsel %vm728, %v827, 0
  %v840 = vsel %vm728, %v829, 0
  %842 = vmatprep.subr.mxu0 0.0
  %843 = vmatpush1.xpose.msra.mxu0 %v836
  %844 = vmatprep.subr.mxu0 0.0
  %845 = vmatpush1.xpose.msra.mxu0 %v838
  %846 = vmatprep.subr.mxu0 0.0
  %847 = vmatpush1.xpose.msra.mxu0 %v840
  %848 = vmatprep.subr.mxu0 0.0
  %849 = vmatpush1.xpose.msra.mxu0 0.0
  %850 = vmatprep.subr.mxu0 0.0
  %851 = vmatpush1.xpose.msra.mxu0 0.0
  %852 = vmatprep.subr.mxu0 0.0
  %853 = vmatpush1.xpose.msra.mxu0 0.0
  %854 = vmatprep.subr.mxu0 0.0
  %855 = vmatpush1.xpose.msra.mxu0 0.0
  %856 = vmatprep.subr.mxu0 0.0
  %857 = vmatpush1.xpose.msra.mxu0 0.0
  %858 = vmatprep.subr.mxu0 0.0
  %859 = vmatpush1.xpose.msra.mxu0 0.0
  %860 = vmatprep.subr.mxu0 0.0
  %861 = vmatpush1.xpose.msra.mxu0 0.0
  %862 = vmatprep.subr.mxu0 0.0
  %863 = vmatpush1.xpose.msra.mxu0 0.0
  %864 = vmatprep.subr.mxu0 0.0
  %865 = vmatpush1.xpose.msra.mxu0 0.0
  %866 = vmatprep.subr.mxu0 0.0
  %867 = vmatpush1.xpose.msra.mxu0 0.0
  %868 = vmatprep.subr.mxu0 0.0
  %869 = vmatpush1.xpose.msra.mxu0 0.0
  %870 = vmatprep.subr.mxu0 0.0
  %871 = vmatpush1.xpose.msra.mxu0 0.0
  %872 = vmatprep.subr.mxu0 0.0
  %873 = vmatpush1.xpose.msra.mxu0 0.0
  %874 = vmatprep.subr.mxu0 0.0
  %875 = vmatpush1.xpose.msra.mxu0 0.0
  %876 = vmatprep.subr.mxu0 0.0
  %877 = vmatpush1.xpose.msra.mxu0 0.0
  %878 = vmatprep.subr.mxu0 0.0
  %879 = vmatpush1.xpose.msra.mxu0 0.0
  %880 = vmatprep.subr.mxu0 0.0
  %881 = vmatpush1.xpose.msra.mxu0 0.0
  %882 = vmatprep.subr.mxu0 0.0
  %883 = vmatpush1.xpose.msra.mxu0 0.0
  %884 = vmatprep.subr.mxu0 0.0
  %885 = vmatpush1.xpose.msra.mxu0 0.0
  %886 = vmatprep.subr.mxu0 0.0
  %887 = vmatpush1.xpose.msra.mxu0 0.0
  %888 = vmatprep.subr.mxu0 0.0
  %889 = vmatpush1.xpose.msra.mxu0 0.0
  %890 = vmatprep.subr.mxu0 0.0
  %891 = vmatpush1.xpose.msra.mxu0 0.0
  %892 = vmatprep.subr.mxu0 0.0
  %893 = vmatpush1.xpose.msra.mxu0 0.0
  %894 = vmatprep.subr.mxu0 0.0
  %895 = vmatpush1.xpose.msra.mxu0 0.0
  %896 = vmatprep.subr.mxu0 0.0
  %897 = vmatpush1.xpose.msra.mxu0 0.0
  %898 = vmatprep.subr.mxu0 0.0
  %899 = vmatpush1.xpose.msra.mxu0 0.0
  %900 = vmatprep.subr.mxu0 0.0
  %901 = vmatpush1.xpose.msra.mxu0 0.0
  %902 = vmatprep.subr.mxu0 0.0
  %903 = vmatpush1.xpose.msra.mxu0 0.0
  %904 = vmatprep.subr.mxu0 0.0
  %905 = vmatpush1.xpose.msra.mxu0 0.0
  %906 = vmatprep.mubr.f32.mxu0 0.0
  %907 = vmatmul.mubr.f32.gmra.mrb[0].mxu0 %v830
  %v908 = vpop.f32.mrb[0].mxu0
  %v909 = vadd.f32 0.0, %v908
  %v910 = vpop.f32.mrb[0].mxu0
  %911 = vmatprep.mubr.f32.mxu0 0.0
  %912 = vmatmul.mubr.f32.gmra.mrb[0].mxu0 %v832
  %v913 = vpop.f32.mrb[0].mxu0
  %v914 = vadd.f32 0.0, %v913
  %v915 = vpop.f32.mrb[0].mxu0
  %916 = vmatprep.mubr.f32.mxu0 0.0
  %917 = vmatmul.mubr.f32.gmra.mrb[0].mxu0 %v834
  %v918 = vpop.f32.mrb[0].mxu0
  %v919 = vadd.f32 0.0, %v918
  %v920 = vpop.f32.mrb[0].mxu0
  %921 = vdwg.mxu0
  %925 = vrot.lane.b32.xlu0 %v306, 120
  %v926 = vpop.permute.xlu0 %925
  %927 = vrot.lane.b32.xlu0 %v311, 120
  %v928 = vpop.permute.xlu0 %927
  %929 = vrot.lane.b32.xlu0 %v316, 120
  %v930 = vpop.permute.xlu0 %929
  %v931 = vsel %vm728, %v306, 0
  %v933 = vsel %vm728, %v311, 0
  %v935 = vsel %vm728, %v316, 0
  %v937 = vsel %vm728, %v926, 0
  %v939 = vsel %vm728, %v928, 0
  %v941 = vsel %vm728, %v930, 0
  %943 = vmatprep.subr.mxu0 0.0
  %944 = vmatpush1.xpose.msra.mxu0 %v937
  %945 = vmatprep.subr.mxu0 0.0
  %946 = vmatpush1.xpose.msra.mxu0 %v939
  %947 = vmatprep.subr.mxu0 0.0
  %948 = vmatpush1.xpose.msra.mxu0 %v941
  %949 = vmatprep.subr.mxu0 0.0
  %950 = vmatpush1.xpose.msra.mxu0 0.0
  %951 = vmatprep.subr.mxu0 0.0
  %952 = vmatpush1.xpose.msra.mxu0 0.0
  %953 = vmatprep.subr.mxu0 0.0
  %954 = vmatpush1.xpose.msra.mxu0 0.0
  %955 = vmatprep.subr.mxu0 0.0
  %956 = vmatpush1.xpose.msra.mxu0 0.0
  %957 = vmatprep.subr.mxu0 0.0
  %958 = vmatpush1.xpose.msra.mxu0 0.0
  %959 = vmatprep.subr.mxu0 0.0
  %960 = vmatpush1.xpose.msra.mxu0 0.0
  %961 = vmatprep.subr.mxu0 0.0
  %962 = vmatpush1.xpose.msra.mxu0 0.0
  %963 = vmatprep.subr.mxu0 0.0
  %964 = vmatpush1.xpose.msra.mxu0 0.0
  %965 = vmatprep.subr.mxu0 0.0
  %966 = vmatpush1.xpose.msra.mxu0 0.0
  %967 = vmatprep.subr.mxu0 0.0
  %968 = vmatpush1.xpose.msra.mxu0 0.0
  %969 = vmatprep.subr.mxu0 0.0
  %970 = vmatpush1.xpose.msra.mxu0 0.0
  %971 = vmatprep.subr.mxu0 0.0
  %972 = vmatpush1.xpose.msra.mxu0 0.0
  %973 = vmatprep.subr.mxu0 0.0
  %974 = vmatpush1.xpose.msra.mxu0 0.0
  %975 = vmatprep.subr.mxu0 0.0
  %976 = vmatpush1.xpose.msra.mxu0 0.0
  %977 = vmatprep.subr.mxu0 0.0
  %978 = vmatpush1.xpose.msra.mxu0 0.0
  %979 = vmatprep.subr.mxu0 0.0
  %980 = vmatpush1.xpose.msra.mxu0 0.0
  %981 = vmatprep.subr.mxu0 0.0
  %982 = vmatpush1.xpose.msra.mxu0 0.0
  %983 = vmatprep.subr.mxu0 0.0
  %984 = vmatpush1.xpose.msra.mxu0 0.0
  %985 = vmatprep.subr.mxu0 0.0
  %986 = vmatpush1.xpose.msra.mxu0 0.0
  %987 = vmatprep.subr.mxu0 0.0
  %988 = vmatpush1.xpose.msra.mxu0 0.0
  %989 = vmatprep.subr.mxu0 0.0
  %990 = vmatpush1.xpose.msra.mxu0 0.0
  %991 = vmatprep.subr.mxu0 0.0
  %992 = vmatpush1.xpose.msra.mxu0 0.0
  %993 = vmatprep.subr.mxu0 0.0
  %994 = vmatpush1.xpose.msra.mxu0 0.0
  %995 = vmatprep.subr.mxu0 0.0
  %996 = vmatpush1.xpose.msra.mxu0 0.0
  %997 = vmatprep.subr.mxu0 0.0
  %998 = vmatpush1.xpose.msra.mxu0 0.0
  %999 = vmatprep.subr.mxu0 0.0
  %1000 = vmatpush1.xpose.msra.mxu0 0.0
  %1001 = vmatprep.subr.mxu0 0.0
  %1002 = vmatpush1.xpose.msra.mxu0 0.0
  %1003 = vmatprep.subr.mxu0 0.0
  %1004 = vmatpush1.xpose.msra.mxu0 0.0
  %1005 = vmatprep.subr.mxu0 0.0
  %1006 = vmatpush1.xpose.msra.mxu0 0.0
  %1007 = vmatprep.mubr.f32.mxu0 0.0
  %1008 = vmatmul.mubr.f32.gmra.mrb[0].mxu0 %v931
  %v1009 = vpop.f32.mrb[0].mxu0
  %v1010 = vadd.f32 0.0, %v1009
  %v1011 = vpop.f32.mrb[0].mxu0
  %1012 = vmatprep.mubr.f32.mxu0 0.0
  %1013 = vmatmul.mubr.f32.gmra.mrb[0].mxu0 %v933
  %v1014 = vpop.f32.mrb[0].mxu0
  %v1015 = vadd.f32 0.0, %v1014
  %v1016 = vpop.f32.mrb[0].mxu0
  %1017 = vmatprep.mubr.f32.mxu0 0.0
  %1018 = vmatmul.mubr.f32.gmra.mrb[0].mxu0 %v935
  %v1019 = vpop.f32.mrb[0].mxu0
  %v1020 = vadd.f32 0.0, %v1019
  %v1021 = vpop.f32.mrb[0].mxu0
  %1022 = vdwg.mxu0
  %1026 = vrot.lane.b32.xlu0 %v386, 120
  %v1027 = vpop.permute.xlu0 %1026
  %1028 = vrot.lane.b32.xlu0 %v391, 120
  %v1029 = vpop.permute.xlu0 %1028
  %1030 = vrot.lane.b32.xlu0 %v396, 120
  %v1031 = vpop.permute.xlu0 %1030
  %v1032 = vsel %vm728, %v386, 0
  %v1034 = vsel %vm728, %v391, 0
  %v1036 = vsel %vm728, %v396, 0
  %v1038 = vsel %vm728, %v1027, 0
  %v1040 = vsel %vm728, %v1029, 0
  %v1042 = vsel %vm728, %v1031, 0
  %1044 = vmatprep.subr.mxu0 0.0
  %1045 = vmatpush1.xpose.msra.mxu0 %v1038
  %1046 = vmatprep.subr.mxu0 0.0
  %1047 = vmatpush1.xpose.msra.mxu0 %v1040
  %1048 = vmatprep.subr.mxu0 0.0
  %1049 = vmatpush1.xpose.msra.mxu0 %v1042
  %1050 = vmatprep.subr.mxu0 0.0
  %1051 = vmatpush1.xpose.msra.mxu0 0.0
  %1052 = vmatprep.subr.mxu0 0.0
  %1053 = vmatpush1.xpose.msra.mxu0 0.0
  %1054 = vmatprep.subr.mxu0 0.0
  %1055 = vmatpush1.xpose.msra.mxu0 0.0
  %1056 = vmatprep.subr.mxu0 0.0
  %1057 = vmatpush1.xpose.msra.mxu0 0.0
  %1058 = vmatprep.subr.mxu0 0.0
  %1059 = vmatpush1.xpose.msra.mxu0 0.0
  %1060 = vmatprep.subr.mxu0 0.0
  %1061 = vmatpush1.xpose.msra.mxu0 0.0
  %1062 = vmatprep.subr.mxu0 0.0
  %1063 = vmatpush1.xpose.msra.mxu0 0.0
  %1064 = vmatprep.subr.mxu0 0.0
  %1065 = vmatpush1.xpose.msra.mxu0 0.0
  %1066 = vmatprep.subr.mxu0 0.0
  %1067 = vmatpush1.xpose.msra.mxu0 0.0
  %1068 = vmatprep.subr.mxu0 0.0
  %1069 = vmatpush1.xpose.msra.mxu0 0.0
  %1070 = vmatprep.subr.mxu0 0.0
  %1071 = vmatpush1.xpose.msra.mxu0 0.0
  %1072 = vmatprep.subr.mxu0 0.0
  %1073 = vmatpush1.xpose.msra.mxu0 0.0
  %1074 = vmatprep.subr.mxu0 0.0
  %1075 = vmatpush1.xpose.msra.mxu0 0.0
  %1076 = vmatprep.subr.mxu0 0.0
  %1077 = vmatpush1.xpose.msra.mxu0 0.0
  %1078 = vmatprep.subr.mxu0 0.0
  %1079 = vmatpush1.xpose.msra.mxu0 0.0
  %1080 = vmatprep.subr.mxu0 0.0
  %1081 = vmatpush1.xpose.msra.mxu0 0.0
  %1082 = vmatprep.subr.mxu0 0.0
  %1083 = vmatpush1.xpose.msra.mxu0 0.0
  %1084 = vmatprep.subr.mxu0 0.0
  %1085 = vmatpush1.xpose.msra.mxu0 0.0
  %1086 = vmatprep.subr.mxu0 0.0
  %1087 = vmatpush1.xpose.msra.mxu0 0.0
  %1088 = vmatprep.subr.mxu0 0.0
  %1089 = vmatpush1.xpose.msra.mxu0 0.0
  %1090 = vmatprep.subr.mxu0 0.0
  %1091 = vmatpush1.xpose.msra.mxu0 0.0
  %1092 = vmatprep.subr.mxu0 0.0
  %1093 = vmatpush1.xpose.msra.mxu0 0.0
  %1094 = vmatprep.subr.mxu0 0.0
  %1095 = vmatpush1.xpose.msra.mxu0 0.0
  %1096 = vmatprep.subr.mxu0 0.0
  %1097 = vmatpush1.xpose.msra.mxu0 0.0
  %1098 = vmatprep.subr.mxu0 0.0
  %1099 = vmatpush1.xpose.msra.mxu0 0.0
  %1100 = vmatprep.subr.mxu0 0.0
  %1101 = vmatpush1.xpose.msra.mxu0 0.0
  %1102 = vmatprep.subr.mxu0 0.0
  %1103 = vmatpush1.xpose.msra.mxu0 0.0
  %1104 = vmatprep.subr.mxu0 0.0
  %1105 = vmatpush1.xpose.msra.mxu0 0.0
  %1106 = vmatprep.subr.mxu0 0.0
  %1107 = vmatpush1.xpose.msra.mxu0 0.0
  %1108 = vmatprep.mubr.f32.mxu0 0.0
  %1109 = vmatmul.mubr.f32.gmra.mrb[0].mxu0 %v1032
  %v1110 = vpop.f32.mrb[0].mxu0
  %v1111 = vadd.f32 0.0, %v1110
  %v1112 = vpop.f32.mrb[0].mxu0
  %1113 = vmatprep.mubr.f32.mxu0 0.0
  %1114 = vmatmul.mubr.f32.gmra.mrb[0].mxu0 %v1034
  %v1115 = vpop.f32.mrb[0].mxu0
  %v1116 = vadd.f32 0.0, %v1115
  %v1117 = vpop.f32.mrb[0].mxu0
  %1118 = vmatprep.mubr.f32.mxu0 0.0
  %1119 = vmatmul.mubr.f32.gmra.mrb[0].mxu0 %v1036
  %v1120 = vpop.f32.mrb[0].mxu0
  %v1121 = vadd.f32 0.0, %v1120
  %v1122 = vpop.f32.mrb[0].mxu0
  %1123 = vdwg.mxu0
  %1127 = vrot.lane.b32.xlu0 %v466, 120
  %v1128 = vpop.permute.xlu0 %1127
  %1129 = vrot.lane.b32.xlu0 %v471, 120
  %v1130 = vpop.permute.xlu0 %1129
  %1131 = vrot.lane.b32.xlu0 %v476, 120
  %v1132 = vpop.permute.xlu0 %1131
  %v1133 = vsel %vm728, %v466, 0
  %v1135 = vsel %vm728, %v471, 0
  %v1137 = vsel %vm728, %v476, 0
  %v1139 = vsel %vm728, %v1128, 0
  %v1141 = vsel %vm728, %v1130, 0
  %v1143 = vsel %vm728, %v1132, 0
  %1145 = vmatprep.subr.mxu0 0.0
  %1146 = vmatpush1.xpose.msra.mxu0 %v1139
  %1147 = vmatprep.subr.mxu0 0.0
  %1148 = vmatpush1.xpose.msra.mxu0 %v1141
  %1149 = vmatprep.subr.mxu0 0.0
  %1150 = vmatpush1.xpose.msra.mxu0 %v1143
  %1151 = vmatprep.subr.mxu0 0.0
  %1152 = vmatpush1.xpose.msra.mxu0 0.0
  %1153 = vmatprep.subr.mxu0 0.0
  %1154 = vmatpush1.xpose.msra.mxu0 0.0
  %1155 = vmatprep.subr.mxu0 0.0
  %1156 = vmatpush1.xpose.msra.mxu0 0.0
  %1157 = vmatprep.subr.mxu0 0.0
  %1158 = vmatpush1.xpose.msra.mxu0 0.0
  %1159 = vmatprep.subr.mxu0 0.0
  %1160 = vmatpush1.xpose.msra.mxu0 0.0
  %1161 = vmatprep.subr.mxu0 0.0
  %1162 = vmatpush1.xpose.msra.mxu0 0.0
  %1163 = vmatprep.subr.mxu0 0.0
  %1164 = vmatpush1.xpose.msra.mxu0 0.0
  %1165 = vmatprep.subr.mxu0 0.0
  %1166 = vmatpush1.xpose.msra.mxu0 0.0
  %1167 = vmatprep.subr.mxu0 0.0
  %1168 = vmatpush1.xpose.msra.mxu0 0.0
  %1169 = vmatprep.subr.mxu0 0.0
  %1170 = vmatpush1.xpose.msra.mxu0 0.0
  %1171 = vmatprep.subr.mxu0 0.0
  %1172 = vmatpush1.xpose.msra.mxu0 0.0
  %1173 = vmatprep.subr.mxu0 0.0
  %1174 = vmatpush1.xpose.msra.mxu0 0.0
  %1175 = vmatprep.subr.mxu0 0.0
  %1176 = vmatpush1.xpose.msra.mxu0 0.0
  %1177 = vmatprep.subr.mxu0 0.0
  %1178 = vmatpush1.xpose.msra.mxu0 0.0
  %1179 = vmatprep.subr.mxu0 0.0
  %1180 = vmatpush1.xpose.msra.mxu0 0.0
  %1181 = vmatprep.subr.mxu0 0.0
  %1182 = vmatpush1.xpose.msra.mxu0 0.0
  %1183 = vmatprep.subr.mxu0 0.0
  %1184 = vmatpush1.xpose.msra.mxu0 0.0
  %1185 = vmatprep.subr.mxu0 0.0
  %1186 = vmatpush1.xpose.msra.mxu0 0.0
  %1187 = vmatprep.subr.mxu0 0.0
  %1188 = vmatpush1.xpose.msra.mxu0 0.0
  %1189 = vmatprep.subr.mxu0 0.0
  %1190 = vmatpush1.xpose.msra.mxu0 0.0
  %1191 = vmatprep.subr.mxu0 0.0
  %1192 = vmatpush1.xpose.msra.mxu0 0.0
  %1193 = vmatprep.subr.mxu0 0.0
  %1194 = vmatpush1.xpose.msra.mxu0 0.0
  %1195 = vmatprep.subr.mxu0 0.0
  %1196 = vmatpush1.xpose.msra.mxu0 0.0
  %1197 = vmatprep.subr.mxu0 0.0
  %1198 = vmatpush1.xpose.msra.mxu0 0.0
  %1199 = vmatprep.subr.mxu0 0.0
  %1200 = vmatpush1.xpose.msra.mxu0 0.0
  %1201 = vmatprep.subr.mxu0 0.0
  %1202 = vmatpush1.xpose.msra.mxu0 0.0
  %1203 = vmatprep.subr.mxu0 0.0
  %1204 = vmatpush1.xpose.msra.mxu0 0.0
  %1205 = vmatprep.subr.mxu0 0.0
  %1206 = vmatpush1.xpose.msra.mxu0 0.0
  %1207 = vmatprep.subr.mxu0 0.0
  %1208 = vmatpush1.xpose.msra.mxu0 0.0
  %1209 = vmatprep.mubr.f32.mxu0 0.0
  %1210 = vmatmul.mubr.f32.gmra.mrb[0].mxu0 %v1133
  %v1211 = vpop.f32.mrb[0].mxu0
  %v1212 = vadd.f32 0.0, %v1211
  %v1213 = vpop.f32.mrb[0].mxu0
  %1214 = vmatprep.mubr.f32.mxu0 0.0
  %1215 = vmatmul.mubr.f32.gmra.mrb[0].mxu0 %v1135
  %v1216 = vpop.f32.mrb[0].mxu0
  %v1217 = vadd.f32 0.0, %v1216
  %v1218 = vpop.f32.mrb[0].mxu0
  %1219 = vmatprep.mubr.f32.mxu0 0.0
  %1220 = vmatmul.mubr.f32.gmra.mrb[0].mxu0 %v1137
  %v1221 = vpop.f32.mrb[0].mxu0
  %v1222 = vadd.f32 0.0, %v1221
  %v1223 = vpop.f32.mrb[0].mxu0
  %1224 = vdwg.mxu0
  %1228 = vrot.lane.b32.xlu0 %v546, 120
  %v1229 = vpop.permute.xlu0 %1228
  %1230 = vrot.lane.b32.xlu0 %v551, 120
  %v1231 = vpop.permute.xlu0 %1230
  %1232 = vrot.lane.b32.xlu0 %v556, 120
  %v1233 = vpop.permute.xlu0 %1232
  %v1234 = vsel %vm728, %v546, 0
  %v1236 = vsel %vm728, %v551, 0
  %v1238 = vsel %vm728, %v556, 0
  %v1240 = vsel %vm728, %v1229, 0
  %v1242 = vsel %vm728, %v1231, 0
  %v1244 = vsel %vm728, %v1233, 0
  %1246 = vmatprep.subr.mxu0 0.0
  %1247 = vmatpush1.xpose.msra.mxu0 %v1240
  %1248 = vmatprep.subr.mxu0 0.0
  %1249 = vmatpush1.xpose.msra.mxu0 %v1242
  %1250 = vmatprep.subr.mxu0 0.0
  %1251 = vmatpush1.xpose.msra.mxu0 %v1244
  %1252 = vmatprep.subr.mxu0 0.0
  %1253 = vmatpush1.xpose.msra.mxu0 0.0
  %1254 = vmatprep.subr.mxu0 0.0
  %1255 = vmatpush1.xpose.msra.mxu0 0.0
  %1256 = vmatprep.subr.mxu0 0.0
  %1257 = vmatpush1.xpose.msra.mxu0 0.0
  %1258 = vmatprep.subr.mxu0 0.0
  %1259 = vmatpush1.xpose.msra.mxu0 0.0
  %1260 = vmatprep.subr.mxu0 0.0
  %1261 = vmatpush1.xpose.msra.mxu0 0.0
  %1262 = vmatprep.subr.mxu0 0.0
  %1263 = vmatpush1.xpose.msra.mxu0 0.0
  %1264 = vmatprep.subr.mxu0 0.0
  %1265 = vmatpush1.xpose.msra.mxu0 0.0
  %1266 = vmatprep.subr.mxu0 0.0
  %1267 = vmatpush1.xpose.msra.mxu0 0.0
  %1268 = vmatprep.subr.mxu0 0.0
  %1269 = vmatpush1.xpose.msra.mxu0 0.0
  %1270 = vmatprep.subr.mxu0 0.0
  %1271 = vmatpush1.xpose.msra.mxu0 0.0
  %1272 = vmatprep.subr.mxu0 0.0
  %1273 = vmatpush1.xpose.msra.mxu0 0.0
  %1274 = vmatprep.subr.mxu0 0.0
  %1275 = vmatpush1.xpose.msra.mxu0 0.0
  %1276 = vmatprep.subr.mxu0 0.0
  %1277 = vmatpush1.xpose.msra.mxu0 0.0
  %1278 = vmatprep.subr.mxu0 0.0
  %1279 = vmatpush1.xpose.msra.mxu0 0.0
  %1280 = vmatprep.subr.mxu0 0.0
  %1281 = vmatpush1.xpose.msra.mxu0 0.0
  %1282 = vmatprep.subr.mxu0 0.0
  %1283 = vmatpush1.xpose.msra.mxu0 0.0
  %1284 = vmatprep.subr.mxu0 0.0
  %1285 = vmatpush1.xpose.msra.mxu0 0.0
  %1286 = vmatprep.subr.mxu0 0.0
  %1287 = vmatpush1.xpose.msra.mxu0 0.0
  %1288 = vmatprep.subr.mxu0 0.0
  %1289 = vmatpush1.xpose.msra.mxu0 0.0
  %1290 = vmatprep.subr.mxu0 0.0
  %1291 = vmatpush1.xpose.msra.mxu0 0.0
  %1292 = vmatprep.subr.mxu0 0.0
  %1293 = vmatpush1.xpose.msra.mxu0 0.0
  %1294 = vmatprep.subr.mxu0 0.0
  %1295 = vmatpush1.xpose.msra.mxu0 0.0
  %1296 = vmatprep.subr.mxu0 0.0
  %1297 = vmatpush1.xpose.msra.mxu0 0.0
  %1298 = vmatprep.subr.mxu0 0.0
  %1299 = vmatpush1.xpose.msra.mxu0 0.0
  %1300 = vmatprep.subr.mxu0 0.0
  %1301 = vmatpush1.xpose.msra.mxu0 0.0
  %1302 = vmatprep.subr.mxu0 0.0
  %1303 = vmatpush1.xpose.msra.mxu0 0.0
  %1304 = vmatprep.subr.mxu0 0.0
  %1305 = vmatpush1.xpose.msra.mxu0 0.0
  %1306 = vmatprep.subr.mxu0 0.0
  %1307 = vmatpush1.xpose.msra.mxu0 0.0
  %1308 = vmatprep.subr.mxu0 0.0
  %1309 = vmatpush1.xpose.msra.mxu0 0.0
  %1310 = vmatprep.mubr.f32.mxu0 0.0
  %1311 = vmatmul.mubr.f32.gmra.mrb[0].mxu0 %v1234
  %v1312 = vpop.f32.mrb[0].mxu0
  %v1313 = vadd.f32 0.0, %v1312
  %v1314 = vpop.f32.mrb[0].mxu0
  %1315 = vmatprep.mubr.f32.mxu0 0.0
  %1316 = vmatmul.mubr.f32.gmra.mrb[0].mxu0 %v1236
  %v1317 = vpop.f32.mrb[0].mxu0
  %v1318 = vadd.f32 0.0, %v1317
  %v1319 = vpop.f32.mrb[0].mxu0
  %1320 = vmatprep.mubr.f32.mxu0 0.0
  %1321 = vmatmul.mubr.f32.gmra.mrb[0].mxu0 %v1238
  %v1322 = vpop.f32.mrb[0].mxu0
  %v1323 = vadd.f32 0.0, %v1322
  %v1324 = vpop.f32.mrb[0].mxu0
  %1325 = vdwg.mxu0
  %1329 = vrot.lane.b32.xlu0 %v626, 120
  %v1330 = vpop.permute.xlu0 %1329
  %1331 = vrot.lane.b32.xlu0 %v631, 120
  %v1332 = vpop.permute.xlu0 %1331
  %1333 = vrot.lane.b32.xlu0 %v636, 120
  %v1334 = vpop.permute.xlu0 %1333
  %v1335 = vsel %vm728, %v626, 0
  %v1337 = vsel %vm728, %v631, 0
  %v1339 = vsel %vm728, %v636, 0
  %v1341 = vsel %vm728, %v1330, 0
  %v1343 = vsel %vm728, %v1332, 0
  %v1345 = vsel %vm728, %v1334, 0
  %1347 = vmatprep.subr.mxu0 0.0
  %1348 = vmatpush1.xpose.msra.mxu0 %v1341
  %1349 = vmatprep.subr.mxu0 0.0
  %1350 = vmatpush1.xpose.msra.mxu0 %v1343
  %1351 = vmatprep.subr.mxu0 0.0
  %1352 = vmatpush1.xpose.msra.mxu0 %v1345
  %1353 = vmatprep.subr.mxu0 0.0
  %1354 = vmatpush1.xpose.msra.mxu0 0.0
  %1355 = vmatprep.subr.mxu0 0.0
  %1356 = vmatpush1.xpose.msra.mxu0 0.0
  %1357 = vmatprep.subr.mxu0 0.0
  %1358 = vmatpush1.xpose.msra.mxu0 0.0
  %1359 = vmatprep.subr.mxu0 0.0
  %1360 = vmatpush1.xpose.msra.mxu0 0.0
  %1361 = vmatprep.subr.mxu0 0.0
  %1362 = vmatpush1.xpose.msra.mxu0 0.0
  %1363 = vmatprep.subr.mxu0 0.0
  %1364 = vmatpush1.xpose.msra.mxu0 0.0
  %1365 = vmatprep.subr.mxu0 0.0
  %1366 = vmatpush1.xpose.msra.mxu0 0.0
  %1367 = vmatprep.subr.mxu0 0.0
  %1368 = vmatpush1.xpose.msra.mxu0 0.0
  %1369 = vmatprep.subr.mxu0 0.0
  %1370 = vmatpush1.xpose.msra.mxu0 0.0
  %1371 = vmatprep.subr.mxu0 0.0
  %1372 = vmatpush1.xpose.msra.mxu0 0.0
  %1373 = vmatprep.subr.mxu0 0.0
  %1374 = vmatpush1.xpose.msra.mxu0 0.0
  %1375 = vmatprep.subr.mxu0 0.0
  %1376 = vmatpush1.xpose.msra.mxu0 0.0
  %1377 = vmatprep.subr.mxu0 0.0
  %1378 = vmatpush1.xpose.msra.mxu0 0.0
  %1379 = vmatprep.subr.mxu0 0.0
  %1380 = vmatpush1.xpose.msra.mxu0 0.0
  %1381 = vmatprep.subr.mxu0 0.0
  %1382 = vmatpush1.xpose.msra.mxu0 0.0
  %1383 = vmatprep.subr.mxu0 0.0
  %1384 = vmatpush1.xpose.msra.mxu0 0.0
  %1385 = vmatprep.subr.mxu0 0.0
  %1386 = vmatpush1.xpose.msra.mxu0 0.0
  %1387 = vmatprep.subr.mxu0 0.0
  %1388 = vmatpush1.xpose.msra.mxu0 0.0
  %1389 = vmatprep.subr.mxu0 0.0
  %1390 = vmatpush1.xpose.msra.mxu0 0.0
  %1391 = vmatprep.subr.mxu0 0.0
  %1392 = vmatpush1.xpose.msra.mxu0 0.0
  %1393 = vmatprep.subr.mxu0 0.0
  %1394 = vmatpush1.xpose.msra.mxu0 0.0
  %1395 = vmatprep.subr.mxu0 0.0
  %1396 = vmatpush1.xpose.msra.mxu0 0.0
  %1397 = vmatprep.subr.mxu0 0.0
  %1398 = vmatpush1.xpose.msra.mxu0 0.0
  %1399 = vmatprep.subr.mxu0 0.0
  %1400 = vmatpush1.xpose.msra.mxu0 0.0
  %1401 = vmatprep.subr.mxu0 0.0
  %1402 = vmatpush1.xpose.msra.mxu0 0.0
  %1403 = vmatprep.subr.mxu0 0.0
  %1404 = vmatpush1.xpose.msra.mxu0 0.0
  %1405 = vmatprep.subr.mxu0 0.0
  %1406 = vmatpush1.xpose.msra.mxu0 0.0
  %1407 = vmatprep.subr.mxu0 0.0
  %1408 = vmatpush1.xpose.msra.mxu0 0.0
  %1409 = vmatprep.subr.mxu0 0.0
  %1410 = vmatpush1.xpose.msra.mxu0 0.0
  %1411 = vmatprep.mubr.f32.mxu0 0.0
  %1412 = vmatmul.mubr.f32.gmra.mrb[0].mxu0 %v1335
  %v1413 = vpop.f32.mrb[0].mxu0
  %v1414 = vadd.f32 0.0, %v1413
  %v1415 = vpop.f32.mrb[0].mxu0
  %1416 = vmatprep.mubr.f32.mxu0 0.0
  %1417 = vmatmul.mubr.f32.gmra.mrb[0].mxu0 %v1337
  %v1418 = vpop.f32.mrb[0].mxu0
  %v1419 = vadd.f32 0.0, %v1418
  %v1420 = vpop.f32.mrb[0].mxu0
  %1421 = vmatprep.mubr.f32.mxu0 0.0
  %1422 = vmatmul.mubr.f32.gmra.mrb[0].mxu0 %v1339
  %v1423 = vpop.f32.mrb[0].mxu0
  %v1424 = vadd.f32 0.0, %v1423
  %v1425 = vpop.f32.mrb[0].mxu0
  %1426 = vdwg.mxu0
  %1430 = vrot.lane.b32.xlu0 %v706, 120
  %v1431 = vpop.permute.xlu0 %1430
  %1432 = vrot.lane.b32.xlu0 %v711, 120
  %v1433 = vpop.permute.xlu0 %1432
  %1434 = vrot.lane.b32.xlu0 %v716, 120
  %v1435 = vpop.permute.xlu0 %1434
  %v1436 = vsel %vm728, %v706, 0
  %v1438 = vsel %vm728, %v711, 0
  %v1440 = vsel %vm728, %v716, 0
  %v1442 = vsel %vm728, %v1431, 0
  %v1444 = vsel %vm728, %v1433, 0
  %v1446 = vsel %vm728, %v1435, 0
  %1448 = vmatprep.subr.mxu0 0.0
  %1449 = vmatpush1.xpose.msra.mxu0 %v1442
  %1450 = vmatprep.subr.mxu0 0.0
  %1451 = vmatpush1.xpose.msra.mxu0 %v1444
  %1452 = vmatprep.subr.mxu0 0.0
  %1453 = vmatpush1.xpose.msra.mxu0 %v1446
  %1454 = vmatprep.subr.mxu0 0.0
  %1455 = vmatpush1.xpose.msra.mxu0 0.0
  %1456 = vmatprep.subr.mxu0 0.0
  %1457 = vmatpush1.xpose.msra.mxu0 0.0
  %1458 = vmatprep.subr.mxu0 0.0
  %1459 = vmatpush1.xpose.msra.mxu0 0.0
  %1460 = vmatprep.subr.mxu0 0.0
  %1461 = vmatpush1.xpose.msra.mxu0 0.0
  %1462 = vmatprep.subr.mxu0 0.0
  %1463 = vmatpush1.xpose.msra.mxu0 0.0
  %1464 = vmatprep.subr.mxu0 0.0
  %1465 = vmatpush1.xpose.msra.mxu0 0.0
  %1466 = vmatprep.subr.mxu0 0.0
  %1467 = vmatpush1.xpose.msra.mxu0 0.0
  %1468 = vmatprep.subr.mxu0 0.0
  %1469 = vmatpush1.xpose.msra.mxu0 0.0
  %1470 = vmatprep.subr.mxu0 0.0
  %1471 = vmatpush1.xpose.msra.mxu0 0.0
  %1472 = vmatprep.subr.mxu0 0.0
  %1473 = vmatpush1.xpose.msra.mxu0 0.0
  %1474 = vmatprep.subr.mxu0 0.0
  %1475 = vmatpush1.xpose.msra.mxu0 0.0
  %1476 = vmatprep.subr.mxu0 0.0
  %1477 = vmatpush1.xpose.msra.mxu0 0.0
  %1478 = vmatprep.subr.mxu0 0.0
  %1479 = vmatpush1.xpose.msra.mxu0 0.0
  %1480 = vmatprep.subr.mxu0 0.0
  %1481 = vmatpush1.xpose.msra.mxu0 0.0
  %1482 = vmatprep.subr.mxu0 0.0
  %1483 = vmatpush1.xpose.msra.mxu0 0.0
  %1484 = vmatprep.subr.mxu0 0.0
  %1485 = vmatpush1.xpose.msra.mxu0 0.0
  %1486 = vmatprep.subr.mxu0 0.0
  %1487 = vmatpush1.xpose.msra.mxu0 0.0
  %1488 = vmatprep.subr.mxu0 0.0
  %1489 = vmatpush1.xpose.msra.mxu0 0.0
  %1490 = vmatprep.subr.mxu0 0.0
  %1491 = vmatpush1.xpose.msra.mxu0 0.0
  %1492 = vmatprep.subr.mxu0 0.0
  %1493 = vmatpush1.xpose.msra.mxu0 0.0
  %1494 = vmatprep.subr.mxu0 0.0
  %1495 = vmatpush1.xpose.msra.mxu0 0.0
  %1496 = vmatprep.subr.mxu0 0.0
  %1497 = vmatpush1.xpose.msra.mxu0 0.0
  %1498 = vmatprep.subr.mxu0 0.0
  %1499 = vmatpush1.xpose.msra.mxu0 0.0
  %1500 = vmatprep.subr.mxu0 0.0
  %1501 = vmatpush1.xpose.msra.mxu0 0.0
  %1502 = vmatprep.subr.mxu0 0.0
  %1503 = vmatpush1.xpose.msra.mxu0 0.0
  %1504 = vmatprep.subr.mxu0 0.0
  %1505 = vmatpush1.xpose.msra.mxu0 0.0
  %1506 = vmatprep.subr.mxu0 0.0
  %1507 = vmatpush1.xpose.msra.mxu0 0.0
  %1508 = vmatprep.subr.mxu0 0.0
  %1509 = vmatpush1.xpose.msra.mxu0 0.0
  %1510 = vmatprep.subr.mxu0 0.0
  %1511 = vmatpush1.xpose.msra.mxu0 0.0
  %1512 = vmatprep.mubr.f32.mxu0 0.0
  %1513 = vmatmul.mubr.f32.gmra.mrb[0].mxu0 %v1436
  %v1514 = vpop.f32.mrb[0].mxu0
  %v1515 = vadd.f32 0.0, %v1514
  %v1516 = vpop.f32.mrb[0].mxu0
  %1517 = vmatprep.mubr.f32.mxu0 0.0
  %1518 = vmatmul.mubr.f32.gmra.mrb[0].mxu0 %v1438
  %v1519 = vpop.f32.mrb[0].mxu0
  %v1520 = vadd.f32 0.0, %v1519
  %v1521 = vpop.f32.mrb[0].mxu0
  %1522 = vmatprep.mubr.f32.mxu0 0.0
  %1523 = vmatmul.mubr.f32.gmra.mrb[0].mxu0 %v1440
  %v1524 = vpop.f32.mrb[0].mxu0
  %v1525 = vadd.f32 0.0, %v1524
  %v1526 = vpop.f32.mrb[0].mxu0
  %1527 = vdwg.mxu0
  %v1528 = vmul.f32 %v808, 0.25
  %v1529 = vmul.f32 %v813, 0.25
  %v1530 = vmul.f32 %v818, 0.25
  %v1531 = vmul.f32 %v909, 0.25
  %v1532 = vmul.f32 %v914, 0.25
  %v1533 = vmul.f32 %v919, 0.25
  %v1534 = vmul.f32 %v1010, 0.25
  %v1535 = vmul.f32 %v1015, 0.25
  %v1536 = vmul.f32 %v1020, 0.25
  %v1537 = vmul.f32 %v1111, 0.25
  %v1538 = vmul.f32 %v1116, 0.25
  %v1539 = vmul.f32 %v1121, 0.25
  %v1540 = vmul.f32 %v1212, 0.25
  %v1541 = vmul.f32 %v1217, 0.25
  %v1542 = vmul.f32 %v1222, 0.25
  %v1543 = vmul.f32 %v1313, 0.25
  %v1544 = vmul.f32 %v1318, 0.25
  %v1545 = vmul.f32 %v1323, 0.25
  %v1546 = vmul.f32 %v1414, 0.25
  %v1547 = vmul.f32 %v1419, 0.25
  %v1548 = vmul.f32 %v1424, 0.25
  %v1549 = vmul.f32 %v1515, 0.25
  %v1550 = vmul.f32 %v1520, 0.25
  %v1551 = vmul.f32 %v1525, 0.25
  %v1552 = vld [vmem:[%s4] sm:$0xff]
  %v1553 = vld [vmem:[%s4 + $0x8] sm:$0xff]
  %v1554 = vld [vmem:[%s4 + $0x10] sm:$0x1]
  %vm1555 = vcmp.gt.f32.partialorder %v1552, 0.5
  %vm1556 = vcmp.gt.f32.partialorder %v1553, 0.5
  %vm1557 = vcmp.gt.f32.partialorder %v1554, 0.5
  %v1558 = vsel %vm1555, %v1540, %v1528
  %v1559 = vsel %vm1556, %v1541, %v1529
  %v1560 = vsel %vm1557, %v1542, %v1530
  %v1561 = vsel %vm1555, %v1543, %v1531
  %v1562 = vsel %vm1556, %v1544, %v1532
  %v1563 = vsel %vm1557, %v1545, %v1533
  %v1564 = vsel %vm1555, %v1546, %v1534
  %v1565 = vsel %vm1556, %v1547, %v1535
  %v1566 = vsel %vm1557, %v1548, %v1536
  %v1567 = vsel %vm1555, %v1549, %v1537
  %v1568 = vsel %vm1556, %v1550, %v1538
  %v1569 = vsel %vm1557, %v1551, %v1539
  %vm1570 = vcmask 138240
  %v1571 = vsel %vm1570, %v1558, -inf
  %1572 = vmax.xlane.f32.xlu0 %v1571
  %v1573 = vpop.xlane.xlu0 %1572
  %v1574 = vsel %vm1570, %v1559, -inf
  %1575 = vmax.xlane.f32.xlu0 %v1574
  %v1576 = vpop.xlane.xlu0 %1575
  %vm1577 = vcmask 131072
  %v1578 = vsel %vm1577, %v1560, -inf
  %1579 = vmax.xlane.f32.xlu0 %v1578
  %v1580 = vpop.xlane.xlu0 %1579
  %v1581 = vsel %vm1570, %v1561, -inf
  %1582 = vmax.xlane.f32.xlu0 %v1581
  %v1583 = vpop.xlane.xlu0 %1582
  %v1584 = vsel %vm1570, %v1562, -inf
  %1585 = vmax.xlane.f32.xlu0 %v1584
  %v1586 = vpop.xlane.xlu0 %1585
  %v1587 = vsel %vm1577, %v1563, -inf
  %1588 = vmax.xlane.f32.xlu0 %v1587
  %v1589 = vpop.xlane.xlu0 %1588
  %v1590 = vsel %vm1570, %v1564, -inf
  %1591 = vmax.xlane.f32.xlu0 %v1590
  %v1592 = vpop.xlane.xlu0 %1591
  %v1593 = vsel %vm1570, %v1565, -inf
  %1594 = vmax.xlane.f32.xlu0 %v1593
  %v1595 = vpop.xlane.xlu0 %1594
  %v1596 = vsel %vm1577, %v1566, -inf
  %1597 = vmax.xlane.f32.xlu0 %v1596
  %v1598 = vpop.xlane.xlu0 %1597
  %v1599 = vsel %vm1570, %v1567, -inf
  %1600 = vmax.xlane.f32.xlu0 %v1599
  %v1601 = vpop.xlane.xlu0 %1600
  %v1602 = vsel %vm1570, %v1568, -inf
  %1603 = vmax.xlane.f32.xlu0 %v1602
  %v1604 = vpop.xlane.xlu0 %1603
  %v1605 = vsel %vm1577, %v1569, -inf
  %1606 = vmax.xlane.f32.xlu0 %v1605
  %v1607 = vpop.xlane.xlu0 %1606
  %v1608 = vsub.f32 %v1558, %v1573
  %v1609 = vsub.f32 %v1559, %v1576
  %v1610 = vsub.f32 %v1560, %v1580
  %v1611 = vsub.f32 %v1561, %v1583
  %v1612 = vsub.f32 %v1562, %v1586
  %v1613 = vsub.f32 %v1563, %v1589
  %v1614 = vsub.f32 %v1564, %v1592
  %v1615 = vsub.f32 %v1565, %v1595
  %v1616 = vsub.f32 %v1566, %v1598
  %v1617 = vsub.f32 %v1567, %v1601
  %v1618 = vsub.f32 %v1568, %v1604
  %v1619 = vsub.f32 %v1569, %v1607
  %v1620 = vmul.f32 %v1608, 1.442695
  %v1621 = vpow.pop %v1620
  %v1622 = vmul.f32 %v1609, 1.442695
  %v1623 = vpow.pop %v1622
  %v1624 = vmul.f32 %v1610, 1.442695
  %v1625 = vpow.pop %v1624
  %v1626 = vmul.f32 %v1611, 1.442695
  %v1627 = vpow.pop %v1626
  %v1628 = vmul.f32 %v1612, 1.442695
  %v1629 = vpow.pop %v1628
  %v1630 = vmul.f32 %v1613, 1.442695
  %v1631 = vpow.pop %v1630
  %v1632 = vmul.f32 %v1614, 1.442695
  %v1633 = vpow.pop %v1632
  %v1634 = vmul.f32 %v1615, 1.442695
  %v1635 = vpow.pop %v1634
  %v1636 = vmul.f32 %v1616, 1.442695
  %v1637 = vpow.pop %v1636
  %v1638 = vmul.f32 %v1617, 1.442695
  %v1639 = vpow.pop %v1638
  %v1640 = vmul.f32 %v1618, 1.442695
  %v1641 = vpow.pop %v1640
  %v1642 = vmul.f32 %v1619, 1.442695
  %v1643 = vpow.pop %v1642
  %v1644 = vsel %vm1570, %v1621, 0.0
  %1645 = vadd.xlane.f32.xlu0 %v1644
  %v1646 = vpop.xlane.xlu0 %1645
  %v1647 = vsel %vm1570, %v1623, 0.0
  %1648 = vadd.xlane.f32.xlu0 %v1647
  %v1649 = vpop.xlane.xlu0 %1648
  %v1650 = vsel %vm1577, %v1625, 0.0
  %1651 = vadd.xlane.f32.xlu0 %v1650
  %v1652 = vpop.xlane.xlu0 %1651
  %v1653 = vsel %vm1570, %v1627, 0.0
  %1654 = vadd.xlane.f32.xlu0 %v1653
  %v1655 = vpop.xlane.xlu0 %1654
  %v1656 = vsel %vm1570, %v1629, 0.0
  %1657 = vadd.xlane.f32.xlu0 %v1656
  %v1658 = vpop.xlane.xlu0 %1657
  %v1659 = vsel %vm1577, %v1631, 0.0
  %1660 = vadd.xlane.f32.xlu0 %v1659
  %v1661 = vpop.xlane.xlu0 %1660
  %v1662 = vsel %vm1570, %v1633, 0.0
  %1663 = vadd.xlane.f32.xlu0 %v1662
  %v1664 = vpop.xlane.xlu0 %1663
  %v1665 = vsel %vm1570, %v1635, 0.0
  %1666 = vadd.xlane.f32.xlu0 %v1665
  %v1667 = vpop.xlane.xlu0 %1666
  %v1668 = vsel %vm1577, %v1637, 0.0
  %1669 = vadd.xlane.f32.xlu0 %v1668
  %v1670 = vpop.xlane.xlu0 %1669
  %v1671 = vsel %vm1570, %v1639, 0.0
  %1672 = vadd.xlane.f32.xlu0 %v1671
  %v1673 = vpop.xlane.xlu0 %1672
  %v1674 = vsel %vm1570, %v1641, 0.0
  %1675 = vadd.xlane.f32.xlu0 %v1674
  %v1676 = vpop.xlane.xlu0 %1675
  %v1677 = vsel %vm1577, %v1643, 0.0
  %1678 = vadd.xlane.f32.xlu0 %v1677
  %v1679 = vpop.xlane.xlu0 %1678
  %v1680 = vrcp.pop %v1646
  %v1681 = vrcp.pop %v1649
  %v1682 = vrcp.pop %v1652
  %v1683 = vrcp.pop %v1655
  %v1684 = vrcp.pop %v1658
  %v1685 = vrcp.pop %v1661
  %v1686 = vrcp.pop %v1664
  %v1687 = vrcp.pop %v1667
  %v1688 = vrcp.pop %v1670
  %v1689 = vrcp.pop %v1673
  %v1690 = vrcp.pop %v1676
  %v1691 = vrcp.pop %v1679
  %v1692 = vmul.f32 %v1621, %v1680
  %v1693 = vmul.f32 %v1623, %v1681
  %v1694 = vmul.f32 %v1625, %v1682
  %v1695 = vmul.f32 %v1627, %v1683
  %v1696 = vmul.f32 %v1629, %v1684
  %v1697 = vmul.f32 %v1631, %v1685
  %v1698 = vmul.f32 %v1633, %v1686
  %v1699 = vmul.f32 %v1635, %v1687
  %v1700 = vmul.f32 %v1637, %v1688
  %v1701 = vmul.f32 %v1639, %v1689
  %v1702 = vmul.f32 %v1641, %v1690
  %v1703 = vmul.f32 %v1643, %v1691
  %1704 = vst.msk [vmem:[%s6] sm:$0xff] %vm1570, %v1692
  %1705 = vst.msk [vmem:[%s6 + $0x8] sm:$0xff] %vm1570, %v1693
  %1706 = vst.msk [vmem:[%s6 + $0x10] sm:$0x1] %vm1577, %v1694
  %1707 = vst.msk [vmem:[%s6 + $0x18] sm:$0xff] %vm1570, %v1695
  %1708 = vst.msk [vmem:[%s6 + $0x20] sm:$0xff] %vm1570, %v1696
  %1709 = vst.msk [vmem:[%s6 + $0x28] sm:$0x1] %vm1577, %v1697
  %1710 = vst.msk [vmem:[%s6 + $0x30] sm:$0xff] %vm1570, %v1698
  %1711 = vst.msk [vmem:[%s6 + $0x38] sm:$0xff] %vm1570, %v1699
  %1712 = vst.msk [vmem:[%s6 + $0x40] sm:$0x1] %vm1577, %v1700
  %1713 = vst.msk [vmem:[%s6 + $0x48] sm:$0xff] %vm1570, %v1701
  %1714 = vst.msk [vmem:[%s6 + $0x50] sm:$0xff] %vm1570, %v1702
  %1715 = vst.msk [vmem:[%s6 + $0x58] sm:$0x1] %vm1577, %v1703
  %1716 = vrot.lane.b32.xlu0 %v137, 112
  %v1717 = vpop.permute.xlu0 %1716
  %1718 = vrot.lane.b32.xlu0 %v142, 112
  %v1719 = vpop.permute.xlu0 %1718
  %1720 = vrot.lane.b32.xlu0 %v147, 112
  %v1721 = vpop.permute.xlu0 %1720
  %v1725 = vsel %vm1570, %v1692, 0
  %v1728 = vsel %vm1570, %v1693, 0
  %v1731 = vsel %vm1570, %v1694, 0
  %vm1733 = vcmask 1040384
  %v1734 = vsel %vm1733, %v1721, 0
  %1736 = vmatprep.subr.mxu0 0.0
  %1737 = vmatpush1.msra.mxu0 %v1717
  %1738 = vmatprep.subr.mxu0 0.0
  %1739 = vmatpush1.msra.mxu0 %v1719
  %1740 = vmatprep.subr.mxu0 0.0
  %1741 = vmatpush1.msra.mxu0 %v1734
  %1742 = vmatprep.subr.mxu0 0.0
  %1743 = vmatpush1.msra.mxu0 0.0
  %1744 = vmatprep.subr.mxu0 0.0
  %1745 = vmatpush1.msra.mxu0 0.0
  %1746 = vmatprep.subr.mxu0 0.0
  %1747 = vmatpush1.msra.mxu0 0.0
  %1748 = vmatprep.subr.mxu0 0.0
  %1749 = vmatpush1.msra.mxu0 0.0
  %1750 = vmatprep.subr.mxu0 0.0
  %1751 = vmatpush1.msra.mxu0 0.0
  %1752 = vmatprep.subr.mxu0 0.0
  %1753 = vmatpush1.msra.mxu0 0.0
  %1754 = vmatprep.subr.mxu0 0.0
  %1755 = vmatpush1.msra.mxu0 0.0
  %1756 = vmatprep.subr.mxu0 0.0
  %1757 = vmatpush1.msra.mxu0 0.0
  %1758 = vmatprep.subr.mxu0 0.0
  %1759 = vmatpush1.msra.mxu0 0.0
  %1760 = vmatprep.subr.mxu0 0.0
  %1761 = vmatpush1.msra.mxu0 0.0
  %1762 = vmatprep.subr.mxu0 0.0
  %1763 = vmatpush1.msra.mxu0 0.0
  %1764 = vmatprep.subr.mxu0 0.0
  %1765 = vmatpush1.msra.mxu0 0.0
  %1766 = vmatprep.subr.mxu0 0.0
  %1767 = vmatpush1.msra.mxu0 0.0
  %1768 = vmatprep.subr.mxu0 0.0
  %1769 = vmatpush1.msra.mxu0 0.0
  %1770 = vmatprep.subr.mxu0 0.0
  %1771 = vmatpush1.msra.mxu0 0.0
  %1772 = vmatprep.subr.mxu0 0.0
  %1773 = vmatpush1.msra.mxu0 0.0
  %1774 = vmatprep.subr.mxu0 0.0
  %1775 = vmatpush1.msra.mxu0 0.0
  %1776 = vmatprep.subr.mxu0 0.0
  %1777 = vmatpush1.msra.mxu0 0.0
  %1778 = vmatprep.subr.mxu0 0.0
  %1779 = vmatpush1.msra.mxu0 0.0
  %1780 = vmatprep.subr.mxu0 0.0
  %1781 = vmatpush1.msra.mxu0 0.0
  %1782 = vmatprep.subr.mxu0 0.0
  %1783 = vmatpush1.msra.mxu0 0.0
  %1784 = vmatprep.subr.mxu0 0.0
  %1785 = vmatpush1.msra.mxu0 0.0
  %1786 = vmatprep.subr.mxu0 0.0
  %1787 = vmatpush1.msra.mxu0 0.0
  %1788 = vmatprep.subr.mxu0 0.0
  %1789 = vmatpush1.msra.mxu0 0.0
  %1790 = vmatprep.subr.mxu0 0.0
  %1791 = vmatpush1.msra.mxu0 0.0
  %1792 = vmatprep.subr.mxu0 0.0
  %1793 = vmatpush1.msra.mxu0 0.0
  %1794 = vmatprep.subr.mxu0 0.0
  %1795 = vmatpush1.msra.mxu0 0.0
  %1796 = vmatprep.subr.mxu0 0.0
  %1797 = vmatpush1.msra.mxu0 0.0
  %1798 = vmatprep.subr.mxu0 0.0
  %1799 = vmatpush1.msra.mxu0 0.0
  %1800 = vmatprep.mubr.f32.mxu0 0.0
  %1801 = vmatmul.mubr.f32.gmra.mrb[0].mxu0 %v1725
  %v1802 = vpop.f32.mrb[0].mxu0
  %v1803 = vadd.f32 0.0, %v1802
  %v1804 = vpop.f32.mrb[0].mxu0
  %1805 = vmatprep.mubr.f32.mxu0 0.0
  %1806 = vmatmul.mubr.f32.gmra.mrb[0].mxu0 %v1728
  %v1807 = vpop.f32.mrb[0].mxu0
  %v1808 = vadd.f32 0.0, %v1807
  %v1809 = vpop.f32.mrb[0].mxu0
  %1810 = vmatprep.mubr.f32.mxu0 0.0
  %1811 = vmatmul.mubr.f32.gmra.mrb[0].mxu0 %v1731
  %v1812 = vpop.f32.mrb[0].mxu0
  %v1813 = vadd.f32 0.0, %v1812
  %v1814 = vpop.f32.mrb[0].mxu0
  %1815 = vdwg.mxu0
  %1816 = vrot.lane.b32.xlu0 %v217, 112
  %v1817 = vpop.permute.xlu0 %1816
  %1818 = vrot.lane.b32.xlu0 %v222, 112
  %v1819 = vpop.permute.xlu0 %1818
  %1820 = vrot.lane.b32.xlu0 %v227, 112
  %v1821 = vpop.permute.xlu0 %1820
  %v1825 = vsel %vm1570, %v1695, 0
  %v1828 = vsel %vm1570, %v1696, 0
  %v1831 = vsel %vm1570, %v1697, 0
  %v1833 = vsel %vm1733, %v1821, 0
  %1835 = vmatprep.subr.mxu0 0.0
  %1836 = vmatpush1.msra.mxu0 %v1817
  %1837 = vmatprep.subr.mxu0 0.0
  %1838 = vmatpush1.msra.mxu0 %v1819
  %1839 = vmatprep.subr.mxu0 0.0
  %1840 = vmatpush1.msra.mxu0 %v1833
  %1841 = vmatprep.subr.mxu0 0.0
  %1842 = vmatpush1.msra.mxu0 0.0
  %1843 = vmatprep.subr.mxu0 0.0
  %1844 = vmatpush1.msra.mxu0 0.0
  %1845 = vmatprep.subr.mxu0 0.0
  %1846 = vmatpush1.msra.mxu0 0.0
  %1847 = vmatprep.subr.mxu0 0.0
  %1848 = vmatpush1.msra.mxu0 0.0
  %1849 = vmatprep.subr.mxu0 0.0
  %1850 = vmatpush1.msra.mxu0 0.0
  %1851 = vmatprep.subr.mxu0 0.0
  %1852 = vmatpush1.msra.mxu0 0.0
  %1853 = vmatprep.subr.mxu0 0.0
  %1854 = vmatpush1.msra.mxu0 0.0
  %1855 = vmatprep.subr.mxu0 0.0
  %1856 = vmatpush1.msra.mxu0 0.0
  %1857 = vmatprep.subr.mxu0 0.0
  %1858 = vmatpush1.msra.mxu0 0.0
  %1859 = vmatprep.subr.mxu0 0.0
  %1860 = vmatpush1.msra.mxu0 0.0
  %1861 = vmatprep.subr.mxu0 0.0
  %1862 = vmatpush1.msra.mxu0 0.0
  %1863 = vmatprep.subr.mxu0 0.0
  %1864 = vmatpush1.msra.mxu0 0.0
  %1865 = vmatprep.subr.mxu0 0.0
  %1866 = vmatpush1.msra.mxu0 0.0
  %1867 = vmatprep.subr.mxu0 0.0
  %1868 = vmatpush1.msra.mxu0 0.0
  %1869 = vmatprep.subr.mxu0 0.0
  %1870 = vmatpush1.msra.mxu0 0.0
  %1871 = vmatprep.subr.mxu0 0.0
  %1872 = vmatpush1.msra.mxu0 0.0
  %1873 = vmatprep.subr.mxu0 0.0
  %1874 = vmatpush1.msra.mxu0 0.0
  %1875 = vmatprep.subr.mxu0 0.0
  %1876 = vmatpush1.msra.mxu0 0.0
  %1877 = vmatprep.subr.mxu0 0.0
  %1878 = vmatpush1.msra.mxu0 0.0
  %1879 = vmatprep.subr.mxu0 0.0
  %1880 = vmatpush1.msra.mxu0 0.0
  %1881 = vmatprep.subr.mxu0 0.0
  %1882 = vmatpush1.msra.mxu0 0.0
  %1883 = vmatprep.subr.mxu0 0.0
  %1884 = vmatpush1.msra.mxu0 0.0
  %1885 = vmatprep.subr.mxu0 0.0
  %1886 = vmatpush1.msra.mxu0 0.0
  %1887 = vmatprep.subr.mxu0 0.0
  %1888 = vmatpush1.msra.mxu0 0.0
  %1889 = vmatprep.subr.mxu0 0.0
  %1890 = vmatpush1.msra.mxu0 0.0
  %1891 = vmatprep.subr.mxu0 0.0
  %1892 = vmatpush1.msra.mxu0 0.0
  %1893 = vmatprep.subr.mxu0 0.0
  %1894 = vmatpush1.msra.mxu0 0.0
  %1895 = vmatprep.subr.mxu0 0.0
  %1896 = vmatpush1.msra.mxu0 0.0
  %1897 = vmatprep.subr.mxu0 0.0
  %1898 = vmatpush1.msra.mxu0 0.0
  %1899 = vmatprep.mubr.f32.mxu0 0.0
  %1900 = vmatmul.mubr.f32.gmra.mrb[0].mxu0 %v1825
  %v1901 = vpop.f32.mrb[0].mxu0
  %v1902 = vadd.f32 0.0, %v1901
  %v1903 = vpop.f32.mrb[0].mxu0
  %1904 = vmatprep.mubr.f32.mxu0 0.0
  %1905 = vmatmul.mubr.f32.gmra.mrb[0].mxu0 %v1828
  %v1906 = vpop.f32.mrb[0].mxu0
  %v1907 = vadd.f32 0.0, %v1906
  %v1908 = vpop.f32.mrb[0].mxu0
  %1909 = vmatprep.mubr.f32.mxu0 0.0
  %1910 = vmatmul.mubr.f32.gmra.mrb[0].mxu0 %v1831
  %v1911 = vpop.f32.mrb[0].mxu0
  %v1912 = vadd.f32 0.0, %v1911
  %v1913 = vpop.f32.mrb[0].mxu0
  %1914 = vdwg.mxu0
  %1915 = vrot.lane.b32.xlu0 %v306, 112
  %v1916 = vpop.permute.xlu0 %1915
  %1917 = vrot.lane.b32.xlu0 %v311, 112
  %v1918 = vpop.permute.xlu0 %1917
  %1919 = vrot.lane.b32.xlu0 %v316, 112
  %v1920 = vpop.permute.xlu0 %1919
  %v1924 = vsel %vm1570, %v1698, 0
  %v1927 = vsel %vm1570, %v1699, 0
  %v1930 = vsel %vm1570, %v1700, 0
  %v1932 = vsel %vm1733, %v1920, 0
  %1934 = vmatprep.subr.mxu0 0.0
  %1935 = vmatpush1.msra.mxu0 %v1916
  %1936 = vmatprep.subr.mxu0 0.0
  %1937 = vmatpush1.msra.mxu0 %v1918
  %1938 = vmatprep.subr.mxu0 0.0
  %1939 = vmatpush1.msra.mxu0 %v1932
  %1940 = vmatprep.subr.mxu0 0.0
  %1941 = vmatpush1.msra.mxu0 0.0
  %1942 = vmatprep.subr.mxu0 0.0
  %1943 = vmatpush1.msra.mxu0 0.0
  %1944 = vmatprep.subr.mxu0 0.0
  %1945 = vmatpush1.msra.mxu0 0.0
  %1946 = vmatprep.subr.mxu0 0.0
  %1947 = vmatpush1.msra.mxu0 0.0
  %1948 = vmatprep.subr.mxu0 0.0
  %1949 = vmatpush1.msra.mxu0 0.0
  %1950 = vmatprep.subr.mxu0 0.0
  %1951 = vmatpush1.msra.mxu0 0.0
  %1952 = vmatprep.subr.mxu0 0.0
  %1953 = vmatpush1.msra.mxu0 0.0
  %1954 = vmatprep.subr.mxu0 0.0
  %1955 = vmatpush1.msra.mxu0 0.0
  %1956 = vmatprep.subr.mxu0 0.0
  %1957 = vmatpush1.msra.mxu0 0.0
  %1958 = vmatprep.subr.mxu0 0.0
  %1959 = vmatpush1.msra.mxu0 0.0
  %1960 = vmatprep.subr.mxu0 0.0
  %1961 = vmatpush1.msra.mxu0 0.0
  %1962 = vmatprep.subr.mxu0 0.0
  %1963 = vmatpush1.msra.mxu0 0.0
  %1964 = vmatprep.subr.mxu0 0.0
  %1965 = vmatpush1.msra.mxu0 0.0
  %1966 = vmatprep.subr.mxu0 0.0
  %1967 = vmatpush1.msra.mxu0 0.0
  %1968 = vmatprep.subr.mxu0 0.0
  %1969 = vmatpush1.msra.mxu0 0.0
  %1970 = vmatprep.subr.mxu0 0.0
  %1971 = vmatpush1.msra.mxu0 0.0
  %1972 = vmatprep.subr.mxu0 0.0
  %1973 = vmatpush1.msra.mxu0 0.0
  %1974 = vmatprep.subr.mxu0 0.0
  %1975 = vmatpush1.msra.mxu0 0.0
  %1976 = vmatprep.subr.mxu0 0.0
  %1977 = vmatpush1.msra.mxu0 0.0
  %1978 = vmatprep.subr.mxu0 0.0
  %1979 = vmatpush1.msra.mxu0 0.0
  %1980 = vmatprep.subr.mxu0 0.0
  %1981 = vmatpush1.msra.mxu0 0.0
  %1982 = vmatprep.subr.mxu0 0.0
  %1983 = vmatpush1.msra.mxu0 0.0
  %1984 = vmatprep.subr.mxu0 0.0
  %1985 = vmatpush1.msra.mxu0 0.0
  %1986 = vmatprep.subr.mxu0 0.0
  %1987 = vmatpush1.msra.mxu0 0.0
  %1988 = vmatprep.subr.mxu0 0.0
  %1989 = vmatpush1.msra.mxu0 0.0
  %1990 = vmatprep.subr.mxu0 0.0
  %1991 = vmatpush1.msra.mxu0 0.0
  %1992 = vmatprep.subr.mxu0 0.0
  %1993 = vmatpush1.msra.mxu0 0.0
  %1994 = vmatprep.subr.mxu0 0.0
  %1995 = vmatpush1.msra.mxu0 0.0
  %1996 = vmatprep.subr.mxu0 0.0
  %1997 = vmatpush1.msra.mxu0 0.0
  %1998 = vmatprep.mubr.f32.mxu0 0.0
  %1999 = vmatmul.mubr.f32.gmra.mrb[0].mxu0 %v1924
  %v2000 = vpop.f32.mrb[0].mxu0
  %v2001 = vadd.f32 0.0, %v2000
  %v2002 = vpop.f32.mrb[0].mxu0
  %2003 = vmatprep.mubr.f32.mxu0 0.0
  %2004 = vmatmul.mubr.f32.gmra.mrb[0].mxu0 %v1927
  %v2005 = vpop.f32.mrb[0].mxu0
  %v2006 = vadd.f32 0.0, %v2005
  %v2007 = vpop.f32.mrb[0].mxu0
  %2008 = vmatprep.mubr.f32.mxu0 0.0
  %2009 = vmatmul.mubr.f32.gmra.mrb[0].mxu0 %v1930
  %v2010 = vpop.f32.mrb[0].mxu0
  %v2011 = vadd.f32 0.0, %v2010
  %v2012 = vpop.f32.mrb[0].mxu0
  %2013 = vdwg.mxu0
  %2014 = vrot.lane.b32.xlu0 %v386, 112
  %v2015 = vpop.permute.xlu0 %2014
  %2016 = vrot.lane.b32.xlu0 %v391, 112
  %v2017 = vpop.permute.xlu0 %2016
  %2018 = vrot.lane.b32.xlu0 %v396, 112
  %v2019 = vpop.permute.xlu0 %2018
  %v2023 = vsel %vm1570, %v1701, 0
  %v2026 = vsel %vm1570, %v1702, 0
  %v2029 = vsel %vm1570, %v1703, 0
  %v2031 = vsel %vm1733, %v2019, 0
  %2033 = vmatprep.subr.mxu0 0.0
  %2034 = vmatpush1.msra.mxu0 %v2015
  %2035 = vmatprep.subr.mxu0 0.0
  %2036 = vmatpush1.msra.mxu0 %v2017
  %2037 = vmatprep.subr.mxu0 0.0
  %2038 = vmatpush1.msra.mxu0 %v2031
  %2039 = vmatprep.subr.mxu0 0.0
  %2040 = vmatpush1.msra.mxu0 0.0
  %2041 = vmatprep.subr.mxu0 0.0
  %2042 = vmatpush1.msra.mxu0 0.0
  %2043 = vmatprep.subr.mxu0 0.0
  %2044 = vmatpush1.msra.mxu0 0.0
  %2045 = vmatprep.subr.mxu0 0.0
  %2046 = vmatpush1.msra.mxu0 0.0
  %2047 = vmatprep.subr.mxu0 0.0
  %2048 = vmatpush1.msra.mxu0 0.0
  %2049 = vmatprep.subr.mxu0 0.0
  %2050 = vmatpush1.msra.mxu0 0.0
  %2051 = vmatprep.subr.mxu0 0.0
  %2052 = vmatpush1.msra.mxu0 0.0
  %2053 = vmatprep.subr.mxu0 0.0
  %2054 = vmatpush1.msra.mxu0 0.0
  %2055 = vmatprep.subr.mxu0 0.0
  %2056 = vmatpush1.msra.mxu0 0.0
  %2057 = vmatprep.subr.mxu0 0.0
  %2058 = vmatpush1.msra.mxu0 0.0
  %2059 = vmatprep.subr.mxu0 0.0
  %2060 = vmatpush1.msra.mxu0 0.0
  %2061 = vmatprep.subr.mxu0 0.0
  %2062 = vmatpush1.msra.mxu0 0.0
  %2063 = vmatprep.subr.mxu0 0.0
  %2064 = vmatpush1.msra.mxu0 0.0
  %2065 = vmatprep.subr.mxu0 0.0
  %2066 = vmatpush1.msra.mxu0 0.0
  %2067 = vmatprep.subr.mxu0 0.0
  %2068 = vmatpush1.msra.mxu0 0.0
  %2069 = vmatprep.subr.mxu0 0.0
  %2070 = vmatpush1.msra.mxu0 0.0
  %2071 = vmatprep.subr.mxu0 0.0
  %2072 = vmatpush1.msra.mxu0 0.0
  %2073 = vmatprep.subr.mxu0 0.0
  %2074 = vmatpush1.msra.mxu0 0.0
  %2075 = vmatprep.subr.mxu0 0.0
  %2076 = vmatpush1.msra.mxu0 0.0
  %2077 = vmatprep.subr.mxu0 0.0
  %2078 = vmatpush1.msra.mxu0 0.0
  %2079 = vmatprep.subr.mxu0 0.0
  %2080 = vmatpush1.msra.mxu0 0.0
  %2081 = vmatprep.subr.mxu0 0.0
  %2082 = vmatpush1.msra.mxu0 0.0
  %2083 = vmatprep.subr.mxu0 0.0
  %2084 = vmatpush1.msra.mxu0 0.0
  %2085 = vmatprep.subr.mxu0 0.0
  %2086 = vmatpush1.msra.mxu0 0.0
  %2087 = vmatprep.subr.mxu0 0.0
  %2088 = vmatpush1.msra.mxu0 0.0
  %2089 = vmatprep.subr.mxu0 0.0
  %2090 = vmatpush1.msra.mxu0 0.0
  %2091 = vmatprep.subr.mxu0 0.0
  %2092 = vmatpush1.msra.mxu0 0.0
  %2093 = vmatprep.subr.mxu0 0.0
  %2094 = vmatpush1.msra.mxu0 0.0
  %2095 = vmatprep.subr.mxu0 0.0
  %2096 = vmatpush1.msra.mxu0 0.0
  %2097 = vmatprep.mubr.f32.mxu0 0.0
  %2098 = vmatmul.mubr.f32.gmra.mrb[0].mxu0 %v2023
  %v2099 = vpop.f32.mrb[0].mxu0
  %v2100 = vadd.f32 0.0, %v2099
  %v2101 = vpop.f32.mrb[0].mxu0
  %2102 = vmatprep.mubr.f32.mxu0 0.0
  %2103 = vmatmul.mubr.f32.gmra.mrb[0].mxu0 %v2026
  %v2104 = vpop.f32.mrb[0].mxu0
  %v2105 = vadd.f32 0.0, %v2104
  %v2106 = vpop.f32.mrb[0].mxu0
  %2107 = vmatprep.mubr.f32.mxu0 0.0
  %2108 = vmatmul.mubr.f32.gmra.mrb[0].mxu0 %v2029
  %v2109 = vpop.f32.mrb[0].mxu0
  %v2110 = vadd.f32 0.0, %v2109
  %v2111 = vpop.f32.mrb[0].mxu0
  %2112 = vdwg.mxu0
  %v2113 = vld [vmem:[%s2] sm:$0xff]
  %v2114 = vld [vmem:[%s2 + $0x8] sm:$0xff]
  %v2115 = vld [vmem:[%s2 + $0x10] sm:$0xff]
  %v2116 = vld [vmem:[%s2 + $0x18] sm:$0xff]
  %v2118 = vsel %vm728, %v1803, 0
  %v2121 = vsel %vm728, %v1808, 0
  %v2124 = vsel %vm728, %v1813, 0
  %2126 = vmatprep.subr.mxu0 0.0
  %2127 = vmatpush1.msra.mxu0 %v2113
  %2128 = vmatprep.subr.mxu0 0.0
  %2129 = vmatpush1.msra.mxu0 0.0
  %2130 = vmatprep.subr.mxu0 0.0
  %2131 = vmatpush1.msra.mxu0 0.0
  %2132 = vmatprep.subr.mxu0 0.0
  %2133 = vmatpush1.msra.mxu0 0.0
  %2134 = vmatprep.subr.mxu0 0.0
  %2135 = vmatpush1.msra.mxu0 0.0
  %2136 = vmatprep.subr.mxu0 0.0
  %2137 = vmatpush1.msra.mxu0 0.0
  %2138 = vmatprep.subr.mxu0 0.0
  %2139 = vmatpush1.msra.mxu0 0.0
  %2140 = vmatprep.subr.mxu0 0.0
  %2141 = vmatpush1.msra.mxu0 0.0
  %2142 = vmatprep.subr.mxu0 0.0
  %2143 = vmatpush1.msra.mxu0 0.0
  %2144 = vmatprep.subr.mxu0 0.0
  %2145 = vmatpush1.msra.mxu0 0.0
  %2146 = vmatprep.subr.mxu0 0.0
  %2147 = vmatpush1.msra.mxu0 0.0
  %2148 = vmatprep.subr.mxu0 0.0
  %2149 = vmatpush1.msra.mxu0 0.0
  %2150 = vmatprep.subr.mxu0 0.0
  %2151 = vmatpush1.msra.mxu0 0.0
  %2152 = vmatprep.subr.mxu0 0.0
  %2153 = vmatpush1.msra.mxu0 0.0
  %2154 = vmatprep.subr.mxu0 0.0
  %2155 = vmatpush1.msra.mxu0 0.0
  %2156 = vmatprep.subr.mxu0 0.0
  %2157 = vmatpush1.msra.mxu0 0.0
  %2158 = vmatprep.subr.mxu0 0.0
  %2159 = vmatpush1.msra.mxu0 0.0
  %2160 = vmatprep.subr.mxu0 0.0
  %2161 = vmatpush1.msra.mxu0 0.0
  %2162 = vmatprep.subr.mxu0 0.0
  %2163 = vmatpush1.msra.mxu0 0.0
  %2164 = vmatprep.subr.mxu0 0.0
  %2165 = vmatpush1.msra.mxu0 0.0
  %2166 = vmatprep.subr.mxu0 0.0
  %2167 = vmatpush1.msra.mxu0 0.0
  %2168 = vmatprep.subr.mxu0 0.0
  %2169 = vmatpush1.msra.mxu0 0.0
  %2170 = vmatprep.subr.mxu0 0.0
  %2171 = vmatpush1.msra.mxu0 0.0
  %2172 = vmatprep.subr.mxu0 0.0
  %2173 = vmatpush1.msra.mxu0 0.0
  %2174 = vmatprep.subr.mxu0 0.0
  %2175 = vmatpush1.msra.mxu0 0.0
  %2176 = vmatprep.subr.mxu0 0.0
  %2177 = vmatpush1.msra.mxu0 0.0
  %2178 = vmatprep.subr.mxu0 0.0
  %2179 = vmatpush1.msra.mxu0 0.0
  %2180 = vmatprep.subr.mxu0 0.0
  %2181 = vmatpush1.msra.mxu0 0.0
  %2182 = vmatprep.subr.mxu0 0.0
  %2183 = vmatpush1.msra.mxu0 0.0
  %2184 = vmatprep.subr.mxu0 0.0
  %2185 = vmatpush1.msra.mxu0 0.0
  %2186 = vmatprep.subr.mxu0 0.0
  %2187 = vmatpush1.msra.mxu0 0.0
  %2188 = vmatprep.subr.mxu0 0.0
  %2189 = vmatpush1.msra.mxu0 0.0
  %2190 = vmatprep.mubr.f32.mxu0 0.0
  %2191 = vmatmul.mubr.f32.gmra.mrb[0].mxu0 %v2118
  %v2192 = vpop.f32.mrb[0].mxu0
  %v2193 = vadd.f32 0.0, %v2192
  %v2194 = vpop.f32.mrb[0].mxu0
  %2195 = vmatprep.mubr.f32.mxu0 0.0
  %2196 = vmatmul.mubr.f32.gmra.mrb[0].mxu0 %v2121
  %v2197 = vpop.f32.mrb[0].mxu0
  %v2198 = vadd.f32 0.0, %v2197
  %v2199 = vpop.f32.mrb[0].mxu0
  %2200 = vmatprep.mubr.f32.mxu0 0.0
  %2201 = vmatmul.mubr.f32.gmra.mrb[0].mxu0 %v2124
  %v2202 = vpop.f32.mrb[0].mxu0
  %v2203 = vadd.f32 0.0, %v2202
  %v2204 = vpop.f32.mrb[0].mxu0
  %2205 = vdwg.mxu0
  %v2207 = vsel %vm728, %v1902, 0
  %v2210 = vsel %vm728, %v1907, 0
  %v2213 = vsel %vm728, %v1912, 0
  %2215 = vmatprep.subr.mxu0 0.0
  %2216 = vmatpush1.msra.mxu0 %v2114
  %2217 = vmatprep.subr.mxu0 0.0
  %2218 = vmatpush1.msra.mxu0 0.0
  %2219 = vmatprep.subr.mxu0 0.0
  %2220 = vmatpush1.msra.mxu0 0.0
  %2221 = vmatprep.subr.mxu0 0.0
  %2222 = vmatpush1.msra.mxu0 0.0
  %2223 = vmatprep.subr.mxu0 0.0
  %2224 = vmatpush1.msra.mxu0 0.0
  %2225 = vmatprep.subr.mxu0 0.0
  %2226 = vmatpush1.msra.mxu0 0.0
  %2227 = vmatprep.subr.mxu0 0.0
  %2228 = vmatpush1.msra.mxu0 0.0
  %2229 = vmatprep.subr.mxu0 0.0
  %2230 = vmatpush1.msra.mxu0 0.0
  %2231 = vmatprep.subr.mxu0 0.0
  %2232 = vmatpush1.msra.mxu0 0.0
  %2233 = vmatprep.subr.mxu0 0.0
  %2234 = vmatpush1.msra.mxu0 0.0
  %2235 = vmatprep.subr.mxu0 0.0
  %2236 = vmatpush1.msra.mxu0 0.0
  %2237 = vmatprep.subr.mxu0 0.0
  %2238 = vmatpush1.msra.mxu0 0.0
  %2239 = vmatprep.subr.mxu0 0.0
  %2240 = vmatpush1.msra.mxu0 0.0
  %2241 = vmatprep.subr.mxu0 0.0
  %2242 = vmatpush1.msra.mxu0 0.0
  %2243 = vmatprep.subr.mxu0 0.0
  %2244 = vmatpush1.msra.mxu0 0.0
  %2245 = vmatprep.subr.mxu0 0.0
  %2246 = vmatpush1.msra.mxu0 0.0
  %2247 = vmatprep.subr.mxu0 0.0
  %2248 = vmatpush1.msra.mxu0 0.0
  %2249 = vmatprep.subr.mxu0 0.0
  %2250 = vmatpush1.msra.mxu0 0.0
  %2251 = vmatprep.subr.mxu0 0.0
  %2252 = vmatpush1.msra.mxu0 0.0
  %2253 = vmatprep.subr.mxu0 0.0
  %2254 = vmatpush1.msra.mxu0 0.0
  %2255 = vmatprep.subr.mxu0 0.0
  %2256 = vmatpush1.msra.mxu0 0.0
  %2257 = vmatprep.subr.mxu0 0.0
  %2258 = vmatpush1.msra.mxu0 0.0
  %2259 = vmatprep.subr.mxu0 0.0
  %2260 = vmatpush1.msra.mxu0 0.0
  %2261 = vmatprep.subr.mxu0 0.0
  %2262 = vmatpush1.msra.mxu0 0.0
  %2263 = vmatprep.subr.mxu0 0.0
  %2264 = vmatpush1.msra.mxu0 0.0
  %2265 = vmatprep.subr.mxu0 0.0
  %2266 = vmatpush1.msra.mxu0 0.0
  %2267 = vmatprep.subr.mxu0 0.0
  %2268 = vmatpush1.msra.mxu0 0.0
  %2269 = vmatprep.subr.mxu0 0.0
  %2270 = vmatpush1.msra.mxu0 0.0
  %2271 = vmatprep.subr.mxu0 0.0
  %2272 = vmatpush1.msra.mxu0 0.0
  %2273 = vmatprep.subr.mxu0 0.0
  %2274 = vmatpush1.msra.mxu0 0.0
  %2275 = vmatprep.subr.mxu0 0.0
  %2276 = vmatpush1.msra.mxu0 0.0
  %2277 = vmatprep.subr.mxu0 0.0
  %2278 = vmatpush1.msra.mxu0 0.0
  %2279 = vmatprep.mubr.f32.mxu0 0.0
  %2280 = vmatmul.mubr.f32.gmra.mrb[0].mxu0 %v2207
  %v2281 = vpop.f32.mrb[0].mxu0
  %v2282 = vadd.f32 0.0, %v2281
  %v2283 = vpop.f32.mrb[0].mxu0
  %2284 = vmatprep.mubr.f32.mxu0 0.0
  %2285 = vmatmul.mubr.f32.gmra.mrb[0].mxu0 %v2210
  %v2286 = vpop.f32.mrb[0].mxu0
  %v2287 = vadd.f32 0.0, %v2286
  %v2288 = vpop.f32.mrb[0].mxu0
  %2289 = vmatprep.mubr.f32.mxu0 0.0
  %2290 = vmatmul.mubr.f32.gmra.mrb[0].mxu0 %v2213
  %v2291 = vpop.f32.mrb[0].mxu0
  %v2292 = vadd.f32 0.0, %v2291
  %v2293 = vpop.f32.mrb[0].mxu0
  %2294 = vdwg.mxu0
  %v2296 = vsel %vm728, %v2001, 0
  %v2299 = vsel %vm728, %v2006, 0
  %v2302 = vsel %vm728, %v2011, 0
  %2304 = vmatprep.subr.mxu0 0.0
  %2305 = vmatpush1.msra.mxu0 %v2115
  %2306 = vmatprep.subr.mxu0 0.0
  %2307 = vmatpush1.msra.mxu0 0.0
  %2308 = vmatprep.subr.mxu0 0.0
  %2309 = vmatpush1.msra.mxu0 0.0
  %2310 = vmatprep.subr.mxu0 0.0
  %2311 = vmatpush1.msra.mxu0 0.0
  %2312 = vmatprep.subr.mxu0 0.0
  %2313 = vmatpush1.msra.mxu0 0.0
  %2314 = vmatprep.subr.mxu0 0.0
  %2315 = vmatpush1.msra.mxu0 0.0
  %2316 = vmatprep.subr.mxu0 0.0
  %2317 = vmatpush1.msra.mxu0 0.0
  %2318 = vmatprep.subr.mxu0 0.0
  %2319 = vmatpush1.msra.mxu0 0.0
  %2320 = vmatprep.subr.mxu0 0.0
  %2321 = vmatpush1.msra.mxu0 0.0
  %2322 = vmatprep.subr.mxu0 0.0
  %2323 = vmatpush1.msra.mxu0 0.0
  %2324 = vmatprep.subr.mxu0 0.0
  %2325 = vmatpush1.msra.mxu0 0.0
  %2326 = vmatprep.subr.mxu0 0.0
  %2327 = vmatpush1.msra.mxu0 0.0
  %2328 = vmatprep.subr.mxu0 0.0
  %2329 = vmatpush1.msra.mxu0 0.0
  %2330 = vmatprep.subr.mxu0 0.0
  %2331 = vmatpush1.msra.mxu0 0.0
  %2332 = vmatprep.subr.mxu0 0.0
  %2333 = vmatpush1.msra.mxu0 0.0
  %2334 = vmatprep.subr.mxu0 0.0
  %2335 = vmatpush1.msra.mxu0 0.0
  %2336 = vmatprep.subr.mxu0 0.0
  %2337 = vmatpush1.msra.mxu0 0.0
  %2338 = vmatprep.subr.mxu0 0.0
  %2339 = vmatpush1.msra.mxu0 0.0
  %2340 = vmatprep.subr.mxu0 0.0
  %2341 = vmatpush1.msra.mxu0 0.0
  %2342 = vmatprep.subr.mxu0 0.0
  %2343 = vmatpush1.msra.mxu0 0.0
  %2344 = vmatprep.subr.mxu0 0.0
  %2345 = vmatpush1.msra.mxu0 0.0
  %2346 = vmatprep.subr.mxu0 0.0
  %2347 = vmatpush1.msra.mxu0 0.0
  %2348 = vmatprep.subr.mxu0 0.0
  %2349 = vmatpush1.msra.mxu0 0.0
  %2350 = vmatprep.subr.mxu0 0.0
  %2351 = vmatpush1.msra.mxu0 0.0
  %2352 = vmatprep.subr.mxu0 0.0
  %2353 = vmatpush1.msra.mxu0 0.0
  %2354 = vmatprep.subr.mxu0 0.0
  %2355 = vmatpush1.msra.mxu0 0.0
  %2356 = vmatprep.subr.mxu0 0.0
  %2357 = vmatpush1.msra.mxu0 0.0
  %2358 = vmatprep.subr.mxu0 0.0
  %2359 = vmatpush1.msra.mxu0 0.0
  %2360 = vmatprep.subr.mxu0 0.0
  %2361 = vmatpush1.msra.mxu0 0.0
  %2362 = vmatprep.subr.mxu0 0.0
  %2363 = vmatpush1.msra.mxu0 0.0
  %2364 = vmatprep.subr.mxu0 0.0
  %2365 = vmatpush1.msra.mxu0 0.0
  %2366 = vmatprep.subr.mxu0 0.0
  %2367 = vmatpush1.msra.mxu0 0.0
  %2368 = vmatprep.mubr.f32.mxu0 0.0
  %2369 = vmatmul.mubr.f32.gmra.mrb[0].mxu0 %v2296
  %v2370 = vpop.f32.mrb[0].mxu0
  %v2371 = vadd.f32 0.0, %v2370
  %v2372 = vpop.f32.mrb[0].mxu0
  %2373 = vmatprep.mubr.f32.mxu0 0.0
  %2374 = vmatmul.mubr.f32.gmra.mrb[0].mxu0 %v2299
  %v2375 = vpop.f32.mrb[0].mxu0
  %v2376 = vadd.f32 0.0, %v2375
  %v2377 = vpop.f32.mrb[0].mxu0
  %2378 = vmatprep.mubr.f32.mxu0 0.0
  %2379 = vmatmul.mubr.f32.gmra.mrb[0].mxu0 %v2302
  %v2380 = vpop.f32.mrb[0].mxu0
  %v2381 = vadd.f32 0.0, %v2380
  %v2382 = vpop.f32.mrb[0].mxu0
  %2383 = vdwg.mxu0
  %v2385 = vsel %vm728, %v2100, 0
  %v2388 = vsel %vm728, %v2105, 0
  %v2391 = vsel %vm728, %v2110, 0
  %2393 = vmatprep.subr.mxu0 0.0
  %2394 = vmatpush1.msra.mxu0 %v2116
  %2395 = vmatprep.subr.mxu0 0.0
  %2396 = vmatpush1.msra.mxu0 0.0
  %2397 = vmatprep.subr.mxu0 0.0
  %2398 = vmatpush1.msra.mxu0 0.0
  %2399 = vmatprep.subr.mxu0 0.0
  %2400 = vmatpush1.msra.mxu0 0.0
  %2401 = vmatprep.subr.mxu0 0.0
  %2402 = vmatpush1.msra.mxu0 0.0
  %2403 = vmatprep.subr.mxu0 0.0
  %2404 = vmatpush1.msra.mxu0 0.0
  %2405 = vmatprep.subr.mxu0 0.0
  %2406 = vmatpush1.msra.mxu0 0.0
  %2407 = vmatprep.subr.mxu0 0.0
  %2408 = vmatpush1.msra.mxu0 0.0
  %2409 = vmatprep.subr.mxu0 0.0
  %2410 = vmatpush1.msra.mxu0 0.0
  %2411 = vmatprep.subr.mxu0 0.0
  %2412 = vmatpush1.msra.mxu0 0.0
  %2413 = vmatprep.subr.mxu0 0.0
  %2414 = vmatpush1.msra.mxu0 0.0
  %2415 = vmatprep.subr.mxu0 0.0
  %2416 = vmatpush1.msra.mxu0 0.0
  %2417 = vmatprep.subr.mxu0 0.0
  %2418 = vmatpush1.msra.mxu0 0.0
  %2419 = vmatprep.subr.mxu0 0.0
  %2420 = vmatpush1.msra.mxu0 0.0
  %2421 = vmatprep.subr.mxu0 0.0
  %2422 = vmatpush1.msra.mxu0 0.0
  %2423 = vmatprep.subr.mxu0 0.0
  %2424 = vmatpush1.msra.mxu0 0.0
  %2425 = vmatprep.subr.mxu0 0.0
  %2426 = vmatpush1.msra.mxu0 0.0
  %2427 = vmatprep.subr.mxu0 0.0
  %2428 = vmatpush1.msra.mxu0 0.0
  %2429 = vmatprep.subr.mxu0 0.0
  %2430 = vmatpush1.msra.mxu0 0.0
  %2431 = vmatprep.subr.mxu0 0.0
  %2432 = vmatpush1.msra.mxu0 0.0
  %2433 = vmatprep.subr.mxu0 0.0
  %2434 = vmatpush1.msra.mxu0 0.0
  %2435 = vmatprep.subr.mxu0 0.0
  %2436 = vmatpush1.msra.mxu0 0.0
  %2437 = vmatprep.subr.mxu0 0.0
  %2438 = vmatpush1.msra.mxu0 0.0
  %2439 = vmatprep.subr.mxu0 0.0
  %2440 = vmatpush1.msra.mxu0 0.0
  %2441 = vmatprep.subr.mxu0 0.0
  %2442 = vmatpush1.msra.mxu0 0.0
  %2443 = vmatprep.subr.mxu0 0.0
  %2444 = vmatpush1.msra.mxu0 0.0
  %2445 = vmatprep.subr.mxu0 0.0
  %2446 = vmatpush1.msra.mxu0 0.0
  %2447 = vmatprep.subr.mxu0 0.0
  %2448 = vmatpush1.msra.mxu0 0.0
  %2449 = vmatprep.subr.mxu0 0.0
  %2450 = vmatpush1.msra.mxu0 0.0
  %2451 = vmatprep.subr.mxu0 0.0
  %2452 = vmatpush1.msra.mxu0 0.0
  %2453 = vmatprep.subr.mxu0 0.0
  %2454 = vmatpush1.msra.mxu0 0.0
  %2455 = vmatprep.subr.mxu0 0.0
  %2456 = vmatpush1.msra.mxu0 0.0
  %2457 = vmatprep.mubr.f32.mxu0 0.0
  %2458 = vmatmul.mubr.f32.gmra.mrb[0].mxu0 %v2385
  %v2459 = vpop.f32.mrb[0].mxu0
  %v2460 = vadd.f32 0.0, %v2459
  %v2461 = vpop.f32.mrb[0].mxu0
  %2462 = vmatprep.mubr.f32.mxu0 0.0
  %2463 = vmatmul.mubr.f32.gmra.mrb[0].mxu0 %v2388
  %v2464 = vpop.f32.mrb[0].mxu0
  %v2465 = vadd.f32 0.0, %v2464
  %v2466 = vpop.f32.mrb[0].mxu0
  %2467 = vmatprep.mubr.f32.mxu0 0.0
  %2468 = vmatmul.mubr.f32.gmra.mrb[0].mxu0 %v2391
  %v2469 = vpop.f32.mrb[0].mxu0
  %v2470 = vadd.f32 0.0, %v2469
  %v2471 = vpop.f32.mrb[0].mxu0
  %2472 = vdwg.mxu0
  %v2473 = vadd.f32 %v2193, 0.0
  %v2474 = vadd.f32 %v2198, 0.0
  %v2475 = vadd.f32 %v2203, 0.0
  %v2476 = vadd.f32 %v2473, %v2282
  %v2477 = vadd.f32 %v2474, %v2287
  %v2478 = vadd.f32 %v2475, %v2292
  %v2479 = vld [vmem:[%s3] sm:$0x1]
  %v2481 = vlaneseq
  %v2482 = vshrl.u32 %v2481, 7
  %v2483 = vsub.s32 0, %v2482
  %v2484 = vrot.slane %v2479, %v2483
  %v2486 = vadd.f32 %v2476, %v2484
  %v2487 = vadd.f32 %v2477, %v2484
  %v2488 = vadd.f32 %v2478, %v2484
  %v2489 = vadd.f32 %v2371, 0.0
  %v2490 = vadd.f32 %v2376, 0.0
  %v2491 = vadd.f32 %v2381, 0.0
  %v2492 = vadd.f32 %v2489, %v2460
  %v2493 = vadd.f32 %v2490, %v2465
  %v2494 = vadd.f32 %v2491, %v2470
  %v2495 = vadd.f32 %v2492, %v2484
  %v2496 = vadd.f32 %v2493, %v2484
  %v2497 = vadd.f32 %v2494, %v2484
  %2498 = vst.msk [vmem:[%s5] sm:$0xff] %vm60, %v2486
  %2499 = vst.msk [vmem:[%s5 + $0x8] sm:$0xff] %vm60, %v2487
  %vm2500 = vcmask 253952
  %2501 = vst.msk [vmem:[%s5 + $0x10] sm:$0x1] %vm2500, %v2488
  %2502 = vst.msk [vmem:[%s5 + $0x18] sm:$0xff] %vm60, %v2495
  %2503 = vst.msk [vmem:[%s5 + $0x20] sm:$0xff] %vm60, %v2496
  %2504 = vst.msk [vmem:[%s5 + $0x28] sm:$0x1] %vm2500, %v2497
  // Predicated region
  $region22: #{agent_aware_attention.1} parent=0 // pred_check
    _
  $region23: #{agent_aware_attention.1} parent=0 // pred_check_branch
    %2506 = sbr.rel (0) target = $region25
  $region24: #{agent_aware_attention.1} parent=0 // pred_region
    _
  $region25: #{agent_aware_attention.1} parent=0 // pred_fallthru
    _
  // Predicated region
  $region26: #{agent_aware_attention.1} parent=0 // pred_check
    _
  $region27: #{agent_aware_attention.1} parent=0 // pred_check_branch
    %2508 = sbr.rel (0) target = $region29
  $region28: #{agent_aware_attention.1} parent=0 // pred_region
    _
  $region29: #{agent_aware_attention.1} parent=0 // pred_fallthru
    _
  // Predicated region
  $region30: #{agent_aware_attention.1} parent=0 // pred_check
    _
  $region31: #{agent_aware_attention.1} parent=0 // pred_check_branch
    %2510 = sbr.rel (0) target = $region33
  $region32: #{agent_aware_attention.1} parent=0 // pred_region
    _
  $region33: #{agent_aware_attention.1} parent=0 // pred_fallthru
    _
  // Predicated region
  $region34: #{agent_aware_attention.1} parent=0 // pred_check
    _
  $region35: #{agent_aware_attention.1} parent=0 // pred_check_branch
    %2512 = sbr.rel (0) target = $region37
  $region36: #{agent_aware_attention.1} parent=0 // pred_region
    _
  $region37: #{agent_aware_attention.1} parent=0 // pred_fallthru
    _

</llo_original>
